<compile_context>
chip_gen: v5e
topology: v5e:2x2
jax: 0.10.0
libtpu: 0.0.40
codegen_flags: <defaults>
</compile_context>

<pallas_src>
import functools

import jax
import jax.numpy as jnp
from jax.experimental import pallas as pl
from jax.experimental.pallas import tpu as pltpu


# ------------------------------ in-kernel helpers ------------------------------

def _layernorm_f32(x, g, b, eps):
    """LayerNorm over the last dim in f32 (matches nn.LayerNorm, eps=1e-5)."""
    mean = jnp.mean(x, axis=-1, keepdims=True)
    xc = x - mean
    var = jnp.mean(xc * xc, axis=-1, keepdims=True)
    return xc * jax.lax.rsqrt(var + eps) * g.astype(jnp.float32) + b.astype(jnp.float32)


def _gelu_erf(x):
    """Exact (erf) GELU, erf via Abramowitz-Stegun 7.1.26 (|err| < 1.5e-7 ~ f32 eps).
    TODO(synk): swap to jax.lax.erf once an erf lowering is guaranteed in Mosaic."""
    z = x * 0.7071067811865476
    a = jnp.abs(z)
    t = 1.0 / (1.0 + 0.3275911 * a)
    poly = t * (0.254829592 + t * (-0.284496736 + t * (1.421413741
                + t * (-1.453152027 + t * 1.061405429))))
    erf_a = 1.0 - poly * jnp.exp(-a * a)
    erf_z = jnp.where(z < 0, -erf_a, erf_a)
    return 0.5 * x * (1.0 + erf_z)


# ---------------------------------- kernels ----------------------------------

def _patch_embed_kernel(xp_ref, w_ref, b_ref, pos_ref, o_ref):
    # One batch element per grid step: (P, C*p*p) @ (C*p*p, E) + bias + pos_embed.
    xp = xp_ref[0].astype(jnp.float32)
    acc = jnp.dot(xp, w_ref[...].astype(jnp.float32),
                  preferred_element_type=jnp.float32)
    acc = acc + b_ref[...].astype(jnp.float32) + pos_ref[...].astype(jnp.float32)
    o_ref[0] = acc.astype(o_ref.dtype)


def _vit_block_kernel(x_ref, ln1g_ref, ln1b_ref, wqkv_ref, bqkv_ref,
                      wout_ref, bout_ref, ln2g_ref, ln2b_ref,
                      w1_ref, b1_ref, w2_ref, b2_ref, o_ref,
                      *, num_heads, head_dim, eps):
    """One full AttentionBlock for one batch element (block = (1, N, E))."""
    x = x_ref[0].astype(jnp.float32)                       # (N, E)
    E = num_heads * head_dim
    scale = 1.0 / float(head_dim) ** 0.5

    # ---- attention branch: LN1 -> folded (qkv ∘ in_proj) -> per-head attn -> out_proj ----
    h = _layernorm_f32(x, ln1g_ref[...], ln1b_ref[...], eps)
    qkv = jnp.dot(h, wqkv_ref[...].astype(jnp.float32),
                  preferred_element_type=jnp.float32)
    qkv = qkv + bqkv_ref[...].astype(jnp.float32)          # (N, 3E)

    wout = wout_ref[...].astype(jnp.float32)               # (E, E), (in, out) layout
    attn = jnp.broadcast_to(bout_ref[...].astype(jnp.float32), x.shape)
    for hh in range(num_heads):
        lo = hh * head_dim
        hi = lo + head_dim
        q = qkv[:, lo:hi] * scale                          # (N, d)
        k = qkv[:, E + lo:E + hi]                          # (N, d)
        v = qkv[:, 2 * E + lo:2 * E + hi]                  # (N, d)
        s = jax.lax.dot_general(q, k, (((1,), (1,)), ((), ())),
                                preferred_element_type=jnp.float32)   # (N, N)
        s = s - jnp.max(s, axis=-1, keepdims=True)
        p = jnp.exp(s)
        inv = pl.reciprocal(jnp.sum(p, axis=-1, keepdims=True), approx=True)
        o_h = jnp.dot(p, v, preferred_element_type=jnp.float32) * inv  # (N, d)
        # out_proj applied per head and summed == concat(heads) @ Wout^T
        attn = attn + jnp.dot(o_h, wout[lo:hi, :],
                              preferred_element_type=jnp.float32)
    x = x + attn                                            # residual 1

    # ---- MLP branch: LN2 -> fc1 -> exact GELU -> fc2 -> residual (dropout p=0) ----
    h2 = _layernorm_f32(x, ln2g_ref[...], ln2b_ref[...], eps)
    m = jnp.dot(h2, w1_ref[...].astype(jnp.float32),
                preferred_element_type=jnp.float32) + b1_ref[...].astype(jnp.float32)
    m = _gelu_erf(m)
    m = jnp.dot(m, w2_ref[...].astype(jnp.float32),
                preferred_element_type=jnp.float32) + b2_ref[...].astype(jnp.float32)
    o_ref[0] = (x + m).astype(o_ref.dtype)


def _head_kernel(x_ref, g_ref, b_ref, w_ref, bias_ref, o_ref, *, eps):
    # Final LayerNorm + classifier; weight columns are zero-padded to 128 lanes.
    x = x_ref[...].astype(jnp.float32)
    h = _layernorm_f32(x, g_ref[...], b_ref[...], eps)
    out = jnp.dot(h, w_ref[...].astype(jnp.float32),
                  preferred_element_type=jnp.float32) + bias_ref[...].astype(jnp.float32)
    o_ref[...] = out.astype(o_ref.dtype)


# ------------------------------ pallas wrappers ------------------------------

def patch_embed(patches, w_t, bias, pos):
    B, P, K = patches.shape
    E = w_t.shape[1]
    return pl.pallas_call(
        _patch_embed_kernel,
        grid=(B,),
        in_specs=[
            pl.BlockSpec((1, P, K), lambda i: (i, 0, 0)),
            pl.BlockSpec((K, E), lambda i: (0, 0)),
            pl.BlockSpec((1, E), lambda i: (0, 0)),
            pl.BlockSpec((P, E), lambda i: (0, 0)),
        ],
        out_specs=pl.BlockSpec((1, P, E), lambda i: (i, 0, 0)),
        out_shape=jax.ShapeDtypeStruct((B, P, E), patches.dtype),
        compiler_params=pltpu.CompilerParams(dimension_semantics=("parallel",)),
    )(patches, w_t, bias, pos)


def vit_block(x, blk, *, num_heads):
    B, N, E = x.shape
    kern = functools.partial(_vit_block_kernel, num_heads=num_heads,
                             head_dim=E // num_heads, eps=1e-5)

    def tok_spec():
        return pl.BlockSpec((1, N, E), lambda i: (i, 0, 0))

    def full(shape):
        return pl.BlockSpec(shape, lambda i, _n=len(shape): (0,) * _n)

    return pl.pallas_call(
        kern,
        grid=(B,),
        in_specs=[
            tok_spec(),
            full((1, E)), full((1, E)),            # ln1 gamma/beta
            full((E, 3 * E)), full((1, 3 * E)),    # folded qkv+in_proj
            full((E, E)), full((1, E)),            # out_proj
            full((1, E)), full((1, E)),            # ln2 gamma/beta
            full((E, 4 * E)), full((1, 4 * E)),    # fc1
            full((4 * E, E)), full((1, E)),        # fc2
        ],
        out_specs=tok_spec(),
        out_shape=jax.ShapeDtypeStruct((B, N, E), x.dtype),
        compiler_params=pltpu.CompilerParams(dimension_semantics=("parallel",)),
    )(x, blk["ln1_g"], blk["ln1_b"], blk["wqkv_t"], blk["bqkv"],
      blk["wout_t"], blk["bout"], blk["ln2_g"], blk["ln2_b"],
      blk["w1_t"], blk["b1"], blk["w2_t"], blk["b2"])


def classifier_head(feat, lnf_g, lnf_b, w_t, bias):
    B, E = feat.shape
    Np = w_t.shape[1]
    vmem = pl.BlockSpec(memory_space=pltpu.MemorySpace.VMEM)
    return pl.pallas_call(
        functools.partial(_head_kernel, eps=1e-5),
        in_specs=[vmem, vmem, vmem, vmem, vmem],
        out_specs=vmem,
        out_shape=jax.ShapeDtypeStruct((B, Np), feat.dtype),
    )(feat, lnf_g, lnf_b, w_t, bias)


# ------------------------------- forward pass -------------------------------

def vit_forward(params, x, *, patch_size, num_heads, num_classes, cls=True):
    B, C, H, W = x.shape
    p = patch_size
    Hp, Wp = H // p, W // p
    P = Hp * Wp
    E = params["patch_b"].shape[-1]
    K = C * p * p

    # PatchEmbed (Conv2d kernel=stride=p == per-patch linear) fused with pos embed.
    patches = x.reshape(B, C, Hp, p, Wp, p).transpose(0, 2, 4, 1, 3, 5).reshape(B, P, K)
    tok = patch_embed(patches, params["patch_w_t"], params["patch_b"], params["pos_patch"])

    if cls:
        cls_row = jnp.broadcast_to(params["cls_row"].astype(tok.dtype), (B, 1, E))
        tok = jnp.concatenate([cls_row, tok], axis=1)       # structural XLA glue

    for blk in params["blocks"]:
        tok = vit_block(tok, blk, num_heads=num_heads)

    feat = tok[:, 0, :] if cls else jnp.mean(tok, axis=1)
    logits = classifier_head(feat, params["lnf_g"], params["lnf_b"],
                             params["head_w_t"], params["head_b"])
    return logits[:, :num_classes]                          # drop lane padding


# ------------------------------- parameters -------------------------------

def init_vit_params(key, *, img_size, patch_size, num_classes, num_att_layer,
                    num_heads, num_channel, cls=True):
    """Raw parameters in PyTorch layout (same structure as the nn.Module)."""
    assert img_size % patch_size == 0
    E = num_channel * patch_size * patch_size
    assert E % num_heads == 0
    P = (img_size // patch_size) ** 2

    keys = iter(jax.random.split(key, 8 + 14 * num_att_layer))

    def w(shape, std=0.02):
        return std * jax.random.normal(next(keys), shape, jnp.float32)

    params = {
        "patch_w": w((E, num_channel, patch_size, patch_size)),
        "patch_b": w((E,)),
        "pos_embed": w((1, (1 + P) if cls else P, E)),
        "lnf_g": 1.0 + w((E,)),
        "lnf_b": w((E,)),
        "head_w": w((num_classes, E)),
        "head_b": w((num_classes,)),
        "blocks": [],
    }
    if cls:
        params["cls_token"] = w((1, 1, E))
    for _ in range(num_att_layer):
        params["blocks"].append({
            "ln1_g": 1.0 + w((E,)), "ln1_b": w((E,)),
            "qkv_w": w((3 * E, E)), "qkv_b": w((3 * E,)),
            "in_w": w((3 * E, E)), "in_b": w((3 * E,)),
            "out_w": w((E, E)), "out_b": w((E,)),
            "ln2_g": 1.0 + w((E,)), "ln2_b": w((E,)),
            "fc1_w": w((4 * E, E)), "fc1_b": w((4 * E,)),
            "fc2_w": w((E, 4 * E)), "fc2_b": w((E,)),
        })
    return params


def prepare_params(raw, *, cls=True):
    """One-time offline prep: fold qkv+in_proj, pre-transpose weights, pad head."""
    E = raw["patch_b"].shape[0]
    num_classes = raw["head_w"].shape[0]
    pad_classes = ((num_classes + 127) // 128) * 128
    head_w_t = jnp.zeros((E, pad_classes), jnp.float32).at[:, :num_classes].set(
        jnp.transpose(raw["head_w"]))
    head_b = jnp.zeros((1, pad_classes), jnp.float32).at[0, :num_classes].set(raw["head_b"])

    pos = raw["pos_embed"]
    prepped = {
        "patch_w_t": jnp.transpose(raw["patch_w"].reshape(E, -1)),   # (C*p*p, E)
        "patch_b": raw["patch_b"].reshape(1, E),
        "lnf_g": raw["lnf_g"].reshape(1, E),
        "lnf_b": raw["lnf_b"].reshape(1, E),
        "head_w_t": head_w_t,
        "head_b": head_b,
        "blocks": [],
    }
    if cls:
        prepped["cls_row"] = raw["cls_token"] + pos[:, :1, :]        # (1, 1, E)
        prepped["pos_patch"] = pos[0, 1:, :]                         # (P, E)
    else:
        prepped["pos_patch"] = pos[0]

    for blk in raw["blocks"]:
        Wq, Wk, Wv = jnp.split(blk["in_w"], 3, axis=0)
        bq, bk, bv = jnp.split(blk["in_b"], 3, axis=0)
        qw, kw, vw = jnp.split(blk["qkv_w"], 3, axis=0)
        qb, kb, vb = jnp.split(blk["qkv_b"], 3, axis=0)
        # (in_proj ∘ qkv) folded into a single linear map (exact composition).
        wqkv = jnp.concatenate([Wq @ qw, Wk @ kw, Wv @ vw], axis=0)            # (3E, E)
        bqkv = jnp.concatenate([Wq @ qb + bq, Wk @ kb + bk, Wv @ vb + bv], axis=0)
        prepped["blocks"].append({
            "ln1_g": blk["ln1_g"].reshape(1, E), "ln1_b": blk["ln1_b"].reshape(1, E),
            "wqkv_t": jnp.transpose(wqkv),                  # (E, 3E)
            "bqkv": bqkv.reshape(1, 3 * E),
            "wout_t": jnp.transpose(blk["out_w"]),          # (E, E)
            "bout": blk["out_b"].reshape(1, E),
            "ln2_g": blk["ln2_g"].reshape(1, E), "ln2_b": blk["ln2_b"].reshape(1, E),
            "w1_t": jnp.transpose(blk["fc1_w"]),            # (E, 4E)
            "b1": blk["fc1_b"].reshape(1, 4 * E),
            "w2_t": jnp.transpose(blk["fc2_w"]),            # (4E, E)
            "b2": blk["fc2_b"].reshape(1, E),
        })
    return prepped


# ----------------------------------- main -----------------------------------

if __name__ == "__main__":
    img_size, patch_size = 16, 4
    num_channel = 3
    num_classes = 10
    num_att_layer = 2
    num_heads = 4          # dim_embed = 3*4*4 = 48, head_dim = 12
    batch = 2

    key = jax.random.PRNGKey(0)
    kp, kx = jax.random.split(key)
    raw_params = init_vit_params(
        kp, img_size=img_size, patch_size=patch_size, num_classes=num_classes,
        num_att_layer=num_att_layer, num_heads=num_heads, num_channel=num_channel,
        cls=True)
    params = prepare_params(raw_params, cls=True)
    x = jax.random.normal(kx, (batch, num_channel, img_size, img_size), jnp.float32)

    fwd = jax.jit(functools.partial(
        vit_forward, patch_size=patch_size, num_heads=num_heads,
        num_classes=num_classes, cls=True))
    out = fwd(params, x)
    jax.block_until_ready(out)
    assert out.shape == (batch, num_classes), out.shape
    print("KERNEL_OK")
</pallas_src>

<mosaic_0001>
module attributes {stable_mosaic.version = 11 : i64} {
  func.func @_patch_embed_kernel(%arg0: i32, %arg1: memref<1x16x48xf32, #tpu.memory_space<vmem>>, %arg2: memref<48x48xf32, #tpu.memory_space<vmem>>, %arg3: memref<1x48xf32, #tpu.memory_space<vmem>>, %arg4: memref<16x48xf32, #tpu.memory_space<vmem>>, %arg5: memref<1x16x48xf32, #tpu.memory_space<vmem>>) attributes {dimension_semantics = [#tpu.dimension_semantics<parallel>], iteration_bounds = array<i64: 2>, scalar_prefetch = 0 : i64, scratch_operands = 0 : i64, tpu.core_type = #tpu.core_type<tc>, window_params = [{transform_indices = @transform_0, window_bounds = array<i64: 1, 16, 48>}, {pipeline_mode = #tpu.pipeline_mode<synchronous>, transform_indices = @transform_1, window_bounds = array<i64: 48, 48>}, {pipeline_mode = #tpu.pipeline_mode<synchronous>, transform_indices = @transform_2, window_bounds = array<i64: 1, 48>}, {pipeline_mode = #tpu.pipeline_mode<synchronous>, transform_indices = @transform_3, window_bounds = array<i64: 16, 48>}, {transform_indices = @transform_4, window_bounds = array<i64: 1, 16, 48>}]} {
    %c0 = arith.constant 0 : index
    %c0_0 = arith.constant 0 : index
    %c0_1 = arith.constant 0 : index
    %0 = vector.load %arg1[%c0, %c0_0, %c0_1] : memref<1x16x48xf32, #tpu.memory_space<vmem>>, vector<1x16x48xf32>
    %1 = vector.shape_cast %0 : vector<1x16x48xf32> to vector<16x48xf32>
    %c0_2 = arith.constant 0 : index
    %c0_3 = arith.constant 0 : index
    %2 = vector.load %arg2[%c0_2, %c0_3] : memref<48x48xf32, #tpu.memory_space<vmem>>, vector<48x48xf32>
    %cst = arith.constant dense<0.000000e+00> : vector<16x48xf32>
    %3 = tpu.matmul %1, %2, %cst {dimension_numbers = #tpu.dot_dimension_numbers<[1], [0], [0], [1], [0, 0, 1, 1], [], []>} : vector<16x48xf32>, vector<48x48xf32>, vector<16x48xf32> -> vector<16x48xf32>
    %c0_4 = arith.constant 0 : index
    %c0_5 = arith.constant 0 : index
    %4 = vector.load %arg3[%c0_4, %c0_5] : memref<1x48xf32, #tpu.memory_space<vmem>>, vector<1x48xf32>
    %5 = vector.broadcast %4 : vector<1x48xf32> to vector<16x48xf32>
    %6 = arith.addf %3, %5 : vector<16x48xf32>
    %c0_6 = arith.constant 0 : index
    %c0_7 = arith.constant 0 : index
    %7 = vector.load %arg4[%c0_6, %c0_7] : memref<16x48xf32, #tpu.memory_space<vmem>>, vector<16x48xf32>
    %8 = arith.addf %6, %7 : vector<16x48xf32>
    %c0_8 = arith.constant 0 : index
    %c0_9 = arith.constant 0 : index
    %c0_10 = arith.constant 0 : index
    %9 = vector.load %arg5[%c0_8, %c0_9, %c0_10] : memref<1x16x48xf32, #tpu.memory_space<vmem>>, vector<1x16x48xf32>
    %10 = vector.shape_cast %9 : vector<1x16x48xf32> to vector<16x48xf32>
    %11 = vector.shape_cast %8 : vector<16x48xf32> to vector<1x16x48xf32>
    tpu.vector_store %arg5[%c0_8, %c0_9, %c0_10], %11 {strides = array<i32>} : memref<1x16x48xf32, #tpu.memory_space<vmem>>, vector<1x16x48xf32>,
    return
  }
  func.func @transform_0(%arg0: i32) -> (i32, i32, i32) {
    %c0_i32 = arith.constant 0 : i32
    %c0_i32_0 = arith.constant 0 : i32
    %c0_i32_1 = arith.constant 0 : i32
    return %arg0, %c0_i32, %c0_i32_0 : i32, i32, i32
  }
  func.func @transform_1(%arg0: i32) -> (i32, i32) {
    %c0_i32 = arith.constant 0 : i32
    %c0_i32_0 = arith.constant 0 : i32
    %c0_i32_1 = arith.constant 0 : i32
    return %c0_i32, %c0_i32_0 : i32, i32
  }
  func.func @transform_2(%arg0: i32) -> (i32, i32) {
    %c0_i32 = arith.constant 0 : i32
    %c0_i32_0 = arith.constant 0 : i32
    %c0_i32_1 = arith.constant 0 : i32
    return %c0_i32, %c0_i32_0 : i32, i32
  }
  func.func @transform_3(%arg0: i32) -> (i32, i32) {
    %c0_i32 = arith.constant 0 : i32
    %c0_i32_0 = arith.constant 0 : i32
    %c0_i32_1 = arith.constant 0 : i32
    return %c0_i32, %c0_i32_0 : i32, i32
  }
  func.func @transform_4(%arg0: i32) -> (i32, i32, i32) {
    %c0_i32 = arith.constant 0 : i32
    %c0_i32_0 = arith.constant 0 : i32
    %c0_i32_1 = arith.constant 0 : i32
    return %arg0, %c0_i32, %c0_i32_0 : i32, i32, i32
  }
}

module attributes {stable_mosaic.version = 11 : i64} {
  func.func @_vit_block_kernel(%arg0: i32, %arg1: memref<1x17x48xf32, #tpu.memory_space<vmem>>, %arg2: memref<1x48xf32, #tpu.memory_space<vmem>>, %arg3: memref<1x48xf32, #tpu.memory_space<vmem>>, %arg4: memref<48x144xf32, #tpu.memory_space<vmem>>, %arg5: memref<1x144xf32, #tpu.memory_space<vmem>>, %arg6: memref<48x48xf32, #tpu.memory_space<vmem>>, %arg7: memref<1x48xf32, #tpu.memory_space<vmem>>, %arg8: memref<1x48xf32, #tpu.memory_space<vmem>>, %arg9: memref<1x48xf32, #tpu.memory_space<vmem>>, %arg10: memref<48x192xf32, #tpu.memory_space<vmem>>, %arg11: memref<1x192xf32, #tpu.memory_space<vmem>>, %arg12: memref<192x48xf32, #tpu.memory_space<vmem>>, %arg13: memref<1x48xf32, #tpu.memory_space<vmem>>, %arg14: memref<1x17x48xf32, #tpu.memory_space<vmem>>) attributes {dimension_semantics = [#tpu.dimension_semantics<parallel>], iteration_bounds = array<i64: 2>, scalar_prefetch = 0 : i64, scratch_operands = 0 : i64, tpu.core_type = #tpu.core_type<tc>, window_params = [{transform_indices = @transform_0, window_bounds = array<i64: 1, 17, 48>}, {pipeline_mode = #tpu.pipeline_mode<synchronous>, transform_indices = @transform_1, window_bounds = array<i64: 1, 48>}, {pipeline_mode = #tpu.pipeline_mode<synchronous>, transform_indices = @transform_2, window_bounds = array<i64: 1, 48>}, {pipeline_mode = #tpu.pipeline_mode<synchronous>, transform_indices = @transform_3, window_bounds = array<i64: 48, 144>}, {pipeline_mode = #tpu.pipeline_mode<synchronous>, transform_indices = @transform_4, window_bounds = array<i64: 1, 144>}, {pipeline_mode = #tpu.pipeline_mode<synchronous>, transform_indices = @transform_5, window_bounds = array<i64: 48, 48>}, {pipeline_mode = #tpu.pipeline_mode<synchronous>, transform_indices = @transform_6, window_bounds = array<i64: 1, 48>}, {pipeline_mode = #tpu.pipeline_mode<synchronous>, transform_indices = @transform_7, window_bounds = array<i64: 1, 48>}, {pipeline_mode = #tpu.pipeline_mode<synchronous>, transform_indices = @transform_8, window_bounds = array<i64: 1, 48>}, {pipeline_mode = #tpu.pipeline_mode<synchronous>, transform_indices = @transform_9, window_bounds = array<i64: 48, 192>}, {pipeline_mode = #tpu.pipeline_mode<synchronous>, transform_indices = @transform_10, window_bounds = array<i64: 1, 192>}, {pipeline_mode = #tpu.pipeline_mode<synchronous>, transform_indices = @transform_11, window_bounds = array<i64: 192, 48>}, {pipeline_mode = #tpu.pipeline_mode<synchronous>, transform_indices = @transform_12, window_bounds = array<i64: 1, 48>}, {transform_indices = @transform_13, window_bounds = array<i64: 1, 17, 48>}]} {
    %c0 = arith.constant 0 : index
    %c0_0 = arith.constant 0 : index
    %c0_1 = arith.constant 0 : index
    %0 = vector.load %arg1[%c0, %c0_0, %c0_1] : memref<1x17x48xf32, #tpu.memory_space<vmem>>, vector<1x17x48xf32>
    %1 = vector.shape_cast %0 : vector<1x17x48xf32> to vector<17x48xf32>
    %c0_2 = arith.constant 0 : index
    %c0_3 = arith.constant 0 : index
    %2 = vector.load %arg2[%c0_2, %c0_3] : memref<1x48xf32, #tpu.memory_space<vmem>>, vector<1x48xf32>
    %c0_4 = arith.constant 0 : index
    %c0_5 = arith.constant 0 : index
    %3 = vector.load %arg3[%c0_4, %c0_5] : memref<1x48xf32, #tpu.memory_space<vmem>>, vector<1x48xf32>
    %cst = arith.constant dense<0.000000e+00> : vector<17xf32>
    %4 = vector.multi_reduction <add>, %1, %cst [1] : vector<17x48xf32> to vector<17xf32>
    %5 = vector.shape_cast %4 : vector<17xf32> to vector<17x1xf32>
    %cst_6 = arith.constant 4.800000e+01 : f32
    %6 = vector.broadcast %cst_6 : f32 to vector<17x1xf32>
    %7 = arith.divf %5, %6 : vector<17x1xf32>
    %8 = vector.broadcast %7 : vector<17x1xf32> to vector<17x48xf32>
    %9 = arith.subf %1, %8 : vector<17x48xf32>
    %10 = arith.mulf %9, %9 : vector<17x48xf32>
    %cst_7 = arith.constant dense<0.000000e+00> : vector<17xf32>
    %11 = vector.multi_reduction <add>, %10, %cst_7 [1] : vector<17x48xf32> to vector<17xf32>
    %12 = vector.shape_cast %11 : vector<17xf32> to vector<17x1xf32>
    %cst_8 = arith.constant 4.800000e+01 : f32
    %13 = vector.broadcast %cst_8 : f32 to vector<17x1xf32>
    %14 = arith.divf %12, %13 : vector<17x1xf32>
    %cst_9 = arith.constant 9.99999974E-6 : f32
    %15 = vector.broadcast %cst_9 : f32 to vector<17x1xf32>
    %16 = arith.addf %14, %15 : vector<17x1xf32>
    %17 = math.rsqrt %16 : vector<17x1xf32>
    %18 = vector.broadcast %17 : vector<17x1xf32> to vector<17x48xf32>
    %19 = arith.mulf %9, %18 : vector<17x48xf32>
    %20 = vector.broadcast %2 : vector<1x48xf32> to vector<17x48xf32>
    %21 = arith.mulf %19, %20 : vector<17x48xf32>
    %22 = vector.broadcast %3 : vector<1x48xf32> to vector<17x48xf32>
    %23 = arith.addf %21, %22 : vector<17x48xf32>
    %c0_10 = arith.constant 0 : index
    %c0_11 = arith.constant 0 : index
    %24 = vector.load %arg4[%c0_10, %c0_11] : memref<48x144xf32, #tpu.memory_space<vmem>>, vector<48x144xf32>
    %cst_12 = arith.constant dense<0.000000e+00> : vector<17x144xf32>
    %25 = tpu.matmul %23, %24, %cst_12 {dimension_numbers = #tpu.dot_dimension_numbers<[1], [0], [0], [1], [0, 0, 1, 1], [], []>} : vector<17x48xf32>, vector<48x144xf32>, vector<17x144xf32> -> vector<17x144xf32>
    %c0_13 = arith.constant 0 : index
    %c0_14 = arith.constant 0 : index
    %26 = vector.load %arg5[%c0_13, %c0_14] : memref<1x144xf32, #tpu.memory_space<vmem>>, vector<1x144xf32>
    %27 = vector.broadcast %26 : vector<1x144xf32> to vector<17x144xf32>
    %28 = arith.addf %25, %27 : vector<17x144xf32>
    %c0_15 = arith.constant 0 : index
    %c0_16 = arith.constant 0 : index
    %29 = vector.load %arg6[%c0_15, %c0_16] : memref<48x48xf32, #tpu.memory_space<vmem>>, vector<48x48xf32>
    %c0_17 = arith.constant 0 : index
    %c0_18 = arith.constant 0 : index
    %30 = vector.load %arg7[%c0_17, %c0_18] : memref<1x48xf32, #tpu.memory_space<vmem>>, vector<1x48xf32>
    %31 = vector.shape_cast %30 : vector<1x48xf32> to vector<1x48xf32>
    %32 = vector.broadcast %31 : vector<1x48xf32> to vector<17x48xf32>
    %33 = vector.extract_strided_slice %28 {offsets = [0, 0], sizes = [17, 12], strides = [1, 1]} : vector<17x144xf32> to vector<17x12xf32>
    %cst_19 = arith.constant 0.288675129 : f32
    %34 = vector.broadcast %cst_19 : f32 to vector<17x12xf32>
    %35 = arith.mulf %33, %34 : vector<17x12xf32>
    %36 = vector.extract_strided_slice %28 {offsets = [0, 48], sizes = [17, 12], strides = [1, 1]} : vector<17x144xf32> to vector<17x12xf32>
    %37 = vector.extract_strided_slice %28 {offsets = [0, 96], sizes = [17, 12], strides = [1, 1]} : vector<17x144xf32> to vector<17x12xf32>
    %cst_20 = arith.constant dense<0.000000e+00> : vector<17x17xf32>
    %38 = tpu.matmul %35, %36, %cst_20 {dimension_numbers = #tpu.dot_dimension_numbers<[1], [1], [0], [0], [0, 0, 1, 0], [], []>} : vector<17x12xf32>, vector<17x12xf32>, vector<17x17xf32> -> vector<17x17xf32>
    %cst_21 = arith.constant dense<0xFF800000> : vector<17xf32>
    %39 = vector.multi_reduction <maximumf>, %38, %cst_21 [1] : vector<17x17xf32> to vector<17xf32>
    %40 = vector.shape_cast %39 : vector<17xf32> to vector<17x1xf32>
    %41 = vector.broadcast %40 : vector<17x1xf32> to vector<17x17xf32>
    %42 = arith.subf %38, %41 : vector<17x17xf32>
    %43 = math.exp %42 : vector<17x17xf32>
    %cst_22 = arith.constant dense<0.000000e+00> : vector<17xf32>
    %44 = vector.multi_reduction <add>, %43, %cst_22 [1] : vector<17x17xf32> to vector<17xf32>
    %45 = vector.shape_cast %44 : vector<17xf32> to vector<17x1xf32>
    %46 = tpu.reciprocal %45 {approx = true} : vector<17x1xf32> -> vector<17x1xf32>
    %cst_23 = arith.constant dense<0.000000e+00> : vector<17x12xf32>
    %47 = tpu.matmul %43, %37, %cst_23 {dimension_numbers = #tpu.dot_dimension_numbers<[1], [0], [0], [1], [0, 0, 1, 1], [], []>} : vector<17x17xf32>, vector<17x12xf32>, vector<17x12xf32> -> vector<17x12xf32>
    %48 = vector.broadcast %46 : vector<17x1xf32> to vector<17x12xf32>
    %49 = arith.mulf %47, %48 : vector<17x12xf32>
    %50 = vector.extract_strided_slice %29 {offsets = [0, 0], sizes = [12, 48], strides = [1, 1]} : vector<48x48xf32> to vector<12x48xf32>
    %cst_24 = arith.constant dense<0.000000e+00> : vector<17x48xf32>
    %51 = tpu.matmul %49, %50, %cst_24 {dimension_numbers = #tpu.dot_dimension_numbers<[1], [0], [0], [1], [0, 0, 1, 1], [], []>} : vector<17x12xf32>, vector<12x48xf32>, vector<17x48xf32> -> vector<17x48xf32>
    %52 = arith.addf %32, %51 : vector<17x48xf32>
    %53 = vector.extract_strided_slice %28 {offsets = [0, 12], sizes = [17, 12], strides = [1, 1]} : vector<17x144xf32> to vector<17x12xf32>
    %cst_25 = arith.constant 0.288675129 : f32
    %54 = vector.broadcast %cst_25 : f32 to vector<17x12xf32>
    %55 = arith.mulf %53, %54 : vector<17x12xf32>
    %56 = vector.extract_strided_slice %28 {offsets = [0, 60], sizes = [17, 12], strides = [1, 1]} : vector<17x144xf32> to vector<17x12xf32>
    %57 = vector.extract_strided_slice %28 {offsets = [0, 108], sizes = [17, 12], strides = [1, 1]} : vector<17x144xf32> to vector<17x12xf32>
    %cst_26 = arith.constant dense<0.000000e+00> : vector<17x17xf32>
    %58 = tpu.matmul %55, %56, %cst_26 {dimension_numbers = #tpu.dot_dimension_numbers<[1], [1], [0], [0], [0, 0, 1, 0], [], []>} : vector<17x12xf32>, vector<17x12xf32>, vector<17x17xf32> -> vector<17x17xf32>
    %cst_27 = arith.constant dense<0xFF800000> : vector<17xf32>
    %59 = vector.multi_reduction <maximumf>, %58, %cst_27 [1] : vector<17x17xf32> to vector<17xf32>
    %60 = vector.shape_cast %59 : vector<17xf32> to vector<17x1xf32>
    %61 = vector.broadcast %60 : vector<17x1xf32> to vector<17x17xf32>
    %62 = arith.subf %58, %61 : vector<17x17xf32>
    %63 = math.exp %62 : vector<17x17xf32>
    %cst_28 = arith.constant dense<0.000000e+00> : vector<17xf32>
    %64 = vector.multi_reduction <add>, %63, %cst_28 [1] : vector<17x17xf32> to vector<17xf32>
    %65 = vector.shape_cast %64 : vector<17xf32> to vector<17x1xf32>
    %66 = tpu.reciprocal %65 {approx = true} : vector<17x1xf32> -> vector<17x1xf32>
    %cst_29 = arith.constant dense<0.000000e+00> : vector<17x12xf32>
    %67 = tpu.matmul %63, %57, %cst_29 {dimension_numbers = #tpu.dot_dimension_numbers<[1], [0], [0], [1], [0, 0, 1, 1], [], []>} : vector<17x17xf32>, vector<17x12xf32>, vector<17x12xf32> -> vector<17x12xf32>
    %68 = vector.broadcast %66 : vector<17x1xf32> to vector<17x12xf32>
    %69 = arith.mulf %67, %68 : vector<17x12xf32>
    %70 = vector.extract_strided_slice %29 {offsets = [12, 0], sizes = [12, 48], strides = [1, 1]} : vector<48x48xf32> to vector<12x48xf32>
    %cst_30 = arith.constant dense<0.000000e+00> : vector<17x48xf32>
    %71 = tpu.matmul %69, %70, %cst_30 {dimension_numbers = #tpu.dot_dimension_numbers<[1], [0], [0], [1], [0, 0, 1, 1], [], []>} : vector<17x12xf32>, vector<12x48xf32>, vector<17x48xf32> -> vector<17x48xf32>
    %72 = arith.addf %52, %71 : vector<17x48xf32>
    %73 = vector.extract_strided_slice %28 {offsets = [0, 24], sizes = [17, 12], strides = [1, 1]} : vector<17x144xf32> to vector<17x12xf32>
    %cst_31 = arith.constant 0.288675129 : f32
    %74 = vector.broadcast %cst_31 : f32 to vector<17x12xf32>
    %75 = arith.mulf %73, %74 : vector<17x12xf32>
    %76 = vector.extract_strided_slice %28 {offsets = [0, 72], sizes = [17, 12], strides = [1, 1]} : vector<17x144xf32> to vector<17x12xf32>
    %77 = vector.extract_strided_slice %28 {offsets = [0, 120], sizes = [17, 12], strides = [1, 1]} : vector<17x144xf32> to vector<17x12xf32>
    %cst_32 = arith.constant dense<0.000000e+00> : vector<17x17xf32>
    %78 = tpu.matmul %75, %76, %cst_32 {dimension_numbers = #tpu.dot_dimension_numbers<[1], [1], [0], [0], [0, 0, 1, 0], [], []>} : vector<17x12xf32>, vector<17x12xf32>, vector<17x17xf32> -> vector<17x17xf32>
    %cst_33 = arith.constant dense<0xFF800000> : vector<17xf32>
    %79 = vector.multi_reduction <maximumf>, %78, %cst_33 [1] : vector<17x17xf32> to vector<17xf32>
    %80 = vector.shape_cast %79 : vector<17xf32> to vector<17x1xf32>
    %81 = vector.broadcast %80 : vector<17x1xf32> to vector<17x17xf32>
    %82 = arith.subf %78, %81 : vector<17x17xf32>
    %83 = math.exp %82 : vector<17x17xf32>
    %cst_34 = arith.constant dense<0.000000e+00> : vector<17xf32>
    %84 = vector.multi_reduction <add>, %83, %cst_34 [1] : vector<17x17xf32> to vector<17xf32>
    %85 = vector.shape_cast %84 : vector<17xf32> to vector<17x1xf32>
    %86 = tpu.reciprocal %85 {approx = true} : vector<17x1xf32> -> vector<17x1xf32>
    %cst_35 = arith.constant dense<0.000000e+00> : vector<17x12xf32>
    %87 = tpu.matmul %83, %77, %cst_35 {dimension_numbers = #tpu.dot_dimension_numbers<[1], [0], [0], [1], [0, 0, 1, 1], [], []>} : vector<17x17xf32>, vector<17x12xf32>, vector<17x12xf32> -> vector<17x12xf32>
    %88 = vector.broadcast %86 : vector<17x1xf32> to vector<17x12xf32>
    %89 = arith.mulf %87, %88 : vector<17x12xf32>
    %90 = vector.extract_strided_slice %29 {offsets = [24, 0], sizes = [12, 48], strides = [1, 1]} : vector<48x48xf32> to vector<12x48xf32>
    %cst_36 = arith.constant dense<0.000000e+00> : vector<17x48xf32>
    %91 = tpu.matmul %89, %90, %cst_36 {dimension_numbers = #tpu.dot_dimension_numbers<[1], [0], [0], [1], [0, 0, 1, 1], [], []>} : vector<17x12xf32>, vector<12x48xf32>, vector<17x48xf32> -> vector<17x48xf32>
    %92 = arith.addf %72, %91 : vector<17x48xf32>
    %93 = vector.extract_strided_slice %28 {offsets = [0, 36], sizes = [17, 12], strides = [1, 1]} : vector<17x144xf32> to vector<17x12xf32>
    %cst_37 = arith.constant 0.288675129 : f32
    %94 = vector.broadcast %cst_37 : f32 to vector<17x12xf32>
    %95 = arith.mulf %93, %94 : vector<17x12xf32>
    %96 = vector.extract_strided_slice %28 {offsets = [0, 84], sizes = [17, 12], strides = [1, 1]} : vector<17x144xf32> to vector<17x12xf32>
    %97 = vector.extract_strided_slice %28 {offsets = [0, 132], sizes = [17, 12], strides = [1, 1]} : vector<17x144xf32> to vector<17x12xf32>
    %cst_38 = arith.constant dense<0.000000e+00> : vector<17x17xf32>
    %98 = tpu.matmul %95, %96, %cst_38 {dimension_numbers = #tpu.dot_dimension_numbers<[1], [1], [0], [0], [0, 0, 1, 0], [], []>} : vector<17x12xf32>, vector<17x12xf32>, vector<17x17xf32> -> vector<17x17xf32>
    %cst_39 = arith.constant dense<0xFF800000> : vector<17xf32>
    %99 = vector.multi_reduction <maximumf>, %98, %cst_39 [1] : vector<17x17xf32> to vector<17xf32>
    %100 = vector.shape_cast %99 : vector<17xf32> to vector<17x1xf32>
    %101 = vector.broadcast %100 : vector<17x1xf32> to vector<17x17xf32>
    %102 = arith.subf %98, %101 : vector<17x17xf32>
    %103 = math.exp %102 : vector<17x17xf32>
    %cst_40 = arith.constant dense<0.000000e+00> : vector<17xf32>
    %104 = vector.multi_reduction <add>, %103, %cst_40 [1] : vector<17x17xf32> to vector<17xf32>
    %105 = vector.shape_cast %104 : vector<17xf32> to vector<17x1xf32>
    %106 = tpu.reciprocal %105 {approx = true} : vector<17x1xf32> -> vector<17x1xf32>
    %cst_41 = arith.constant dense<0.000000e+00> : vector<17x12xf32>
    %107 = tpu.matmul %103, %97, %cst_41 {dimension_numbers = #tpu.dot_dimension_numbers<[1], [0], [0], [1], [0, 0, 1, 1], [], []>} : vector<17x17xf32>, vector<17x12xf32>, vector<17x12xf32> -> vector<17x12xf32>
    %108 = vector.broadcast %106 : vector<17x1xf32> to vector<17x12xf32>
    %109 = arith.mulf %107, %108 : vector<17x12xf32>
    %110 = vector.extract_strided_slice %29 {offsets = [36, 0], sizes = [12, 48], strides = [1, 1]} : vector<48x48xf32> to vector<12x48xf32>
    %cst_42 = arith.constant dense<0.000000e+00> : vector<17x48xf32>
    %111 = tpu.matmul %109, %110, %cst_42 {dimension_numbers = #tpu.dot_dimension_numbers<[1], [0], [0], [1], [0, 0, 1, 1], [], []>} : vector<17x12xf32>, vector<12x48xf32>, vector<17x48xf32> -> vector<17x48xf32>
    %112 = arith.addf %92, %111 : vector<17x48xf32>
    %113 = arith.addf %1, %112 : vector<17x48xf32>
    %c0_43 = arith.constant 0 : index
    %c0_44 = arith.constant 0 : index
    %114 = vector.load %arg8[%c0_43, %c0_44] : memref<1x48xf32, #tpu.memory_space<vmem>>, vector<1x48xf32>
    %c0_45 = arith.constant 0 : index
    %c0_46 = arith.constant 0 : index
    %115 = vector.load %arg9[%c0_45, %c0_46] : memref<1x48xf32, #tpu.memory_space<vmem>>, vector<1x48xf32>
    %cst_47 = arith.constant dense<0.000000e+00> : vector<17xf32>
    %116 = vector.multi_reduction <add>, %113, %cst_47 [1] : vector<17x48xf32> to vector<17xf32>
    %117 = vector.shape_cast %116 : vector<17xf32> to vector<17x1xf32>
    %cst_48 = arith.constant 4.800000e+01 : f32
    %118 = vector.broadcast %cst_48 : f32 to vector<17x1xf32>
    %119 = arith.divf %117, %118 : vector<17x1xf32>
    %120 = vector.broadcast %119 : vector<17x1xf32> to vector<17x48xf32>
    %121 = arith.subf %113, %120 : vector<17x48xf32>
    %122 = arith.mulf %121, %121 : vector<17x48xf32>
    %cst_49 = arith.constant dense<0.000000e+00> : vector<17xf32>
    %123 = vector.multi_reduction <add>, %122, %cst_49 [1] : vector<17x48xf32> to vector<17xf32>
    %124 = vector.shape_cast %123 : vector<17xf32> to vector<17x1xf32>
    %cst_50 = arith.constant 4.800000e+01 : f32
    %125 = vector.broadcast %cst_50 : f32 to vector<17x1xf32>
    %126 = arith.divf %124, %125 : vector<17x1xf32>
    %cst_51 = arith.constant 9.99999974E-6 : f32
    %127 = vector.broadcast %cst_51 : f32 to vector<17x1xf32>
    %128 = arith.addf %126, %127 : vector<17x1xf32>
    %129 = math.rsqrt %128 : vector<17x1xf32>
    %130 = vector.broadcast %129 : vector<17x1xf32> to vector<17x48xf32>
    %131 = arith.mulf %121, %130 : vector<17x48xf32>
    %132 = vector.broadcast %114 : vector<1x48xf32> to vector<17x48xf32>
    %133 = arith.mulf %131, %132 : vector<17x48xf32>
    %134 = vector.broadcast %115 : vector<1x48xf32> to vector<17x48xf32>
    %135 = arith.addf %133, %134 : vector<17x48xf32>
    %c0_52 = arith.constant 0 : index
    %c0_53 = arith.constant 0 : index
    %136 = vector.load %arg10[%c0_52, %c0_53] : memref<48x192xf32, #tpu.memory_space<vmem>>, vector<48x192xf32>
    %cst_54 = arith.constant dense<0.000000e+00> : vector<17x192xf32>
    %137 = tpu.matmul %135, %136, %cst_54 {dimension_numbers = #tpu.dot_dimension_numbers<[1], [0], [0], [1], [0, 0, 1, 1], [], []>} : vector<17x48xf32>, vector<48x192xf32>, vector<17x192xf32> -> vector<17x192xf32>
    %c0_55 = arith.constant 0 : index
    %c0_56 = arith.constant 0 : index
    %138 = vector.load %arg11[%c0_55, %c0_56] : memref<1x192xf32, #tpu.memory_space<vmem>>, vector<1x192xf32>
    %139 = vector.broadcast %138 : vector<1x192xf32> to vector<17x192xf32>
    %140 = arith.addf %137, %139 : vector<17x192xf32>
    %cst_57 = arith.constant 0.707106769 : f32
    %141 = vector.broadcast %cst_57 : f32 to vector<17x192xf32>
    %142 = arith.mulf %140, %141 : vector<17x192xf32>
    %143 = math.absf %142 : vector<17x192xf32>
    %cst_58 = arith.constant 0.327591091 : f32
    %144 = vector.broadcast %cst_58 : f32 to vector<17x192xf32>
    %145 = arith.mulf %144, %143 : vector<17x192xf32>
    %cst_59 = arith.constant 1.000000e+00 : f32
    %146 = vector.broadcast %cst_59 : f32 to vector<17x192xf32>
    %147 = arith.addf %146, %145 : vector<17x192xf32>
    %cst_60 = arith.constant 1.000000e+00 : f32
    %148 = vector.broadcast %cst_60 : f32 to vector<17x192xf32>
    %149 = arith.divf %148, %147 : vector<17x192xf32>
    %cst_61 = arith.constant 1.06140542 : f32
    %150 = vector.broadcast %cst_61 : f32 to vector<17x192xf32>
    %151 = arith.mulf %149, %150 : vector<17x192xf32>
    %cst_62 = arith.constant -1.45315206 : f32
    %152 = vector.broadcast %cst_62 : f32 to vector<17x192xf32>
    %153 = arith.addf %152, %151 : vector<17x192xf32>
    %154 = arith.mulf %149, %153 : vector<17x192xf32>
    %cst_63 = arith.constant 1.42141378 : f32
    %155 = vector.broadcast %cst_63 : f32 to vector<17x192xf32>
    %156 = arith.addf %155, %154 : vector<17x192xf32>
    %157 = arith.mulf %149, %156 : vector<17x192xf32>
    %cst_64 = arith.constant -0.284496725 : f32
    %158 = vector.broadcast %cst_64 : f32 to vector<17x192xf32>
    %159 = arith.addf %158, %157 : vector<17x192xf32>
    %160 = arith.mulf %149, %159 : vector<17x192xf32>
    %cst_65 = arith.constant 0.254829586 : f32
    %161 = vector.broadcast %cst_65 : f32 to vector<17x192xf32>
    %162 = arith.addf %161, %160 : vector<17x192xf32>
    %163 = arith.mulf %149, %162 : vector<17x192xf32>
    %cst_66 = arith.constant 0.000000e+00 : f32
    %164 = vector.broadcast %cst_66 : f32 to vector<17x192xf32>
    %165 = arith.subf %164, %143 : vector<17x192xf32>
    %166 = arith.mulf %165, %143 : vector<17x192xf32>
    %167 = math.exp %166 : vector<17x192xf32>
    %168 = arith.mulf %163, %167 : vector<17x192xf32>
    %cst_67 = arith.constant 1.000000e+00 : f32
    %169 = vector.broadcast %cst_67 : f32 to vector<17x192xf32>
    %170 = arith.subf %169, %168 : vector<17x192xf32>
    %cst_68 = arith.constant 0.000000e+00 : f32
    %171 = vector.broadcast %cst_68 : f32 to vector<17x192xf32>
    %172 = arith.cmpf olt, %142, %171 : vector<17x192xf32>
    %cst_69 = arith.constant 0.000000e+00 : f32
    %173 = vector.broadcast %cst_69 : f32 to vector<17x192xf32>
    %174 = arith.subf %173, %170 : vector<17x192xf32>
    %175 = arith.select %172, %174, %170 : vector<17x192xi1>, vector<17x192xf32>
    %cst_70 = arith.constant 5.000000e-01 : f32
    %176 = vector.broadcast %cst_70 : f32 to vector<17x192xf32>
    %177 = arith.mulf %176, %140 : vector<17x192xf32>
    %cst_71 = arith.constant 1.000000e+00 : f32
    %178 = vector.broadcast %cst_71 : f32 to vector<17x192xf32>
    %179 = arith.addf %178, %175 : vector<17x192xf32>
    %180 = arith.mulf %177, %179 : vector<17x192xf32>
    %c0_72 = arith.constant 0 : index
    %c0_73 = arith.constant 0 : index
    %181 = vector.load %arg12[%c0_72, %c0_73] : memref<192x48xf32, #tpu.memory_space<vmem>>, vector<192x48xf32>
    %cst_74 = arith.constant dense<0.000000e+00> : vector<17x48xf32>
    %182 = tpu.matmul %180, %181, %cst_74 {dimension_numbers = #tpu.dot_dimension_numbers<[1], [0], [0], [1], [0, 0, 1, 1], [], []>} : vector<17x192xf32>, vector<192x48xf32>, vector<17x48xf32> -> vector<17x48xf32>
    %c0_75 = arith.constant 0 : index
    %c0_76 = arith.constant 0 : index
    %183 = vector.load %arg13[%c0_75, %c0_76] : memref<1x48xf32, #tpu.memory_space<vmem>>, vector<1x48xf32>
    %184 = vector.broadcast %183 : vector<1x48xf32> to vector<17x48xf32>
    %185 = arith.addf %182, %184 : vector<17x48xf32>
    %186 = arith.addf %113, %185 : vector<17x48xf32>
    %c0_77 = arith.constant 0 : index
    %c0_78 = arith.constant 0 : index
    %c0_79 = arith.constant 0 : index
    %187 = vector.load %arg14[%c0_77, %c0_78, %c0_79] : memref<1x17x48xf32, #tpu.memory_space<vmem>>, vector<1x17x48xf32>
    %188 = vector.shape_cast %187 : vector<1x17x48xf32> to vector<17x48xf32>
    %189 = vector.shape_cast %186 : vector<17x48xf32> to vector<1x17x48xf32>
    tpu.vector_store %arg14[%c0_77, %c0_78, %c0_79], %189 {strides = array<i32>} : memref<1x17x48xf32, #tpu.memory_space<vmem>>, vector<1x17x48xf32>,
    return
  }
  func.func @transform_0(%arg0: i32) -> (i32, i32, i32) {
    %c0_i32 = arith.constant 0 : i32
    %c0_i32_0 = arith.constant 0 : i32
    %c0_i32_1 = arith.constant 0 : i32
    return %arg0, %c0_i32, %c0_i32_0 : i32, i32, i32
  }
  func.func @transform_1(%arg0: i32) -> (i32, i32) {
    %c0_i32 = arith.constant 0 : i32
    %c0_i32_0 = arith.constant 0 : i32
    %c0_i32_1 = arith.constant 0 : i32
    return %c0_i32, %c0_i32_0 : i32, i32
  }
  func.func @transform_2(%arg0: i32) -> (i32, i32) {
    %c0_i32 = arith.constant 0 : i32
    %c0_i32_0 = arith.constant 0 : i32
    %c0_i32_1 = arith.constant 0 : i32
    return %c0_i32, %c0_i32_0 : i32, i32
  }
  func.func @transform_3(%arg0: i32) -> (i32, i32) {
    %c0_i32 = arith.constant 0 : i32
    %c0_i32_0 = arith.constant 0 : i32
    %c0_i32_1 = arith.constant 0 : i32
    return %c0_i32, %c0_i32_0 : i32, i32
  }
  func.func @transform_4(%arg0: i32) -> (i32, i32) {
    %c0_i32 = arith.constant 0 : i32
    %c0_i32_0 = arith.constant 0 : i32
    %c0_i32_1 = arith.constant 0 : i32
    return %c0_i32, %c0_i32_0 : i32, i32
  }
  func.func @transform_5(%arg0: i32) -> (i32, i32) {
    %c0_i32 = arith.constant 0 : i32
    %c0_i32_0 = arith.constant 0 : i32
    %c0_i32_1 = arith.constant 0 : i32
    return %c0_i32, %c0_i32_0 : i32, i32
  }
  func.func @transform_6(%arg0: i32) -> (i32, i32) {
    %c0_i32 = arith.constant 0 : i32
    %c0_i32_0 = arith.constant 0 : i32
    %c0_i32_1 = arith.constant 0 : i32
    return %c0_i32, %c0_i32_0 : i32, i32
  }
  func.func @transform_7(%arg0: i32) -> (i32, i32) {
    %c0_i32 = arith.constant 0 : i32
    %c0_i32_0 = arith.constant 0 : i32
    %c0_i32_1 = arith.constant 0 : i32
    return %c0_i32, %c0_i32_0 : i32, i32
  }
  func.func @transform_8(%arg0: i32) -> (i32, i32) {
    %c0_i32 = arith.constant 0 : i32
    %c0_i32_0 = arith.constant 0 : i32
    %c0_i32_1 = arith.constant 0 : i32
    return %c0_i32, %c0_i32_0 : i32, i32
  }
  func.func @transform_9(%arg0: i32) -> (i32, i32) {
    %c0_i32 = arith.constant 0 : i32
    %c0_i32_0 = arith.constant 0 : i32
    %c0_i32_1 = arith.constant 0 : i32
    return %c0_i32, %c0_i32_0 : i32, i32
  }
  func.func @transform_10(%arg0: i32) -> (i32, i32) {
    %c0_i32 = arith.constant 0 : i32
    %c0_i32_0 = arith.constant 0 : i32
    %c0_i32_1 = arith.constant 0 : i32
    return %c0_i32, %c0_i32_0 : i32, i32
  }
  func.func @transform_11(%arg0: i32) -> (i32, i32) {
    %c0_i32 = arith.constant 0 : i32
    %c0_i32_0 = arith.constant 0 : i32
    %c0_i32_1 = arith.constant 0 : i32
    return %c0_i32, %c0_i32_0 : i32, i32
  }
  func.func @transform_12(%arg0: i32) -> (i32, i32) {
    %c0_i32 = arith.constant 0 : i32
    %c0_i32_0 = arith.constant 0 : i32
    %c0_i32_1 = arith.constant 0 : i32
    return %c0_i32, %c0_i32_0 : i32, i32
  }
  func.func @transform_13(%arg0: i32) -> (i32, i32, i32) {
    %c0_i32 = arith.constant 0 : i32
    %c0_i32_0 = arith.constant 0 : i32
    %c0_i32_1 = arith.constant 0 : i32
    return %arg0, %c0_i32, %c0_i32_0 : i32, i32, i32
  }
}

module attributes {stable_mosaic.version = 11 : i64} {
  func.func @_head_kernel(%arg0: memref<2x48xf32, #tpu.memory_space<vmem>>, %arg1: memref<1x48xf32, #tpu.memory_space<vmem>>, %arg2: memref<1x48xf32, #tpu.memory_space<vmem>>, %arg3: memref<48x128xf32, #tpu.memory_space<vmem>>, %arg4: memref<1x128xf32, #tpu.memory_space<vmem>>, %arg5: memref<2x128xf32, #tpu.memory_space<vmem>>) attributes {dimension_semantics = [], scalar_prefetch = 0 : i64, scratch_operands = 0 : i64, tpu.core_type = #tpu.core_type<tc>} {
    %c0 = arith.constant 0 : index
    %c0_0 = arith.constant 0 : index
    %0 = vector.load %arg0[%c0, %c0_0] : memref<2x48xf32, #tpu.memory_space<vmem>>, vector<2x48xf32>
    %c0_1 = arith.constant 0 : index
    %c0_2 = arith.constant 0 : index
    %1 = vector.load %arg1[%c0_1, %c0_2] : memref<1x48xf32, #tpu.memory_space<vmem>>, vector<1x48xf32>
    %c0_3 = arith.constant 0 : index
    %c0_4 = arith.constant 0 : index
    %2 = vector.load %arg2[%c0_3, %c0_4] : memref<1x48xf32, #tpu.memory_space<vmem>>, vector<1x48xf32>
    %cst = arith.constant dense<0.000000e+00> : vector<2xf32>
    %3 = vector.multi_reduction <add>, %0, %cst [1] : vector<2x48xf32> to vector<2xf32>
    %4 = vector.shape_cast %3 : vector<2xf32> to vector<2x1xf32>
    %cst_5 = arith.constant 4.800000e+01 : f32
    %5 = vector.broadcast %cst_5 : f32 to vector<2x1xf32>
    %6 = arith.divf %4, %5 : vector<2x1xf32>
    %7 = vector.broadcast %6 : vector<2x1xf32> to vector<2x48xf32>
    %8 = arith.subf %0, %7 : vector<2x48xf32>
    %9 = arith.mulf %8, %8 : vector<2x48xf32>
    %cst_6 = arith.constant dense<0.000000e+00> : vector<2xf32>
    %10 = vector.multi_reduction <add>, %9, %cst_6 [1] : vector<2x48xf32> to vector<2xf32>
    %11 = vector.shape_cast %10 : vector<2xf32> to vector<2x1xf32>
    %cst_7 = arith.constant 4.800000e+01 : f32
    %12 = vector.broadcast %cst_7 : f32 to vector<2x1xf32>
    %13 = arith.divf %11, %12 : vector<2x1xf32>
    %cst_8 = arith.constant 9.99999974E-6 : f32
    %14 = vector.broadcast %cst_8 : f32 to vector<2x1xf32>
    %15 = arith.addf %13, %14 : vector<2x1xf32>
    %16 = math.rsqrt %15 : vector<2x1xf32>
    %17 = vector.broadcast %16 : vector<2x1xf32> to vector<2x48xf32>
    %18 = arith.mulf %8, %17 : vector<2x48xf32>
    %19 = vector.broadcast %1 : vector<1x48xf32> to vector<2x48xf32>
    %20 = arith.mulf %18, %19 : vector<2x48xf32>
    %21 = vector.broadcast %2 : vector<1x48xf32> to vector<2x48xf32>
    %22 = arith.addf %20, %21 : vector<2x48xf32>
    %c0_9 = arith.constant 0 : index
    %c0_10 = arith.constant 0 : index
    %23 = vector.load %arg3[%c0_9, %c0_10] : memref<48x128xf32, #tpu.memory_space<vmem>>, vector<48x128xf32>
    %cst_11 = arith.constant dense<0.000000e+00> : vector<2x128xf32>
    %24 = tpu.matmul %22, %23, %cst_11 {dimension_numbers = #tpu.dot_dimension_numbers<[1], [0], [0], [1], [0, 0, 1, 1], [], []>} : vector<2x48xf32>, vector<48x128xf32>, vector<2x128xf32> -> vector<2x128xf32>
    %c0_12 = arith.constant 0 : index
    %c0_13 = arith.constant 0 : index
    %25 = vector.load %arg4[%c0_12, %c0_13] : memref<1x128xf32, #tpu.memory_space<vmem>>, vector<1x128xf32>
    %26 = vector.broadcast %25 : vector<1x128xf32> to vector<2x128xf32>
    %27 = arith.addf %24, %26 : vector<2x128xf32>
    %c0_14 = arith.constant 0 : index
    %c0_15 = arith.constant 0 : index
    %28 = vector.load %arg5[%c0_14, %c0_15] : memref<2x128xf32, #tpu.memory_space<vmem>>, vector<2x128xf32>
    tpu.vector_store %arg5[%c0_14, %c0_15], %27 {strides = array<i32>} : memref<2x128xf32, #tpu.memory_space<vmem>>, vector<2x128xf32>,
    return
  }
}

</mosaic_0001>

<llo_original>
// kernel: vit_forward.4
$region0: #{vit_forward.4}
  #allocation0 [shape = 'u32[]', space=smem, size = 0x4, offset = 0x4, fixed_abs, tag = 'smem constant byte address 0x4 - core index']
  #allocation1 [shape = 'u32[72,128]{1,0:T(1,128)}', space=vmem, size = 0x9000, scoped, tag = 'internal scratch']
  %s0 = inlined_call_operand.vmem [shape: f32[2,16,48], index: 0, kind: input, shape index: {}]
  %s1 = inlined_call_operand.vmem [shape: f32[48,48], index: 1, kind: input, shape index: {}]
  %s2 = inlined_call_operand.vmem [shape: f32[1,48], index: 2, kind: input, shape index: {}]
  %s3 = inlined_call_operand.vmem [shape: f32[16,48], index: 3, kind: input, shape index: {}]
  %s4 = inlined_call_operand.vmem [shape: f32[2,16,48], index: 4, kind: output, shape index: {}]
  %s5 = sld [smem:[#allocation0]]
  $region49: #{vit_forward.4} parent=0
    _
  %s7 = ssub.s32 1, %s5
  %s8 = scalar_select 0, %s7, %s5
  loop: start=0, step=1, limit=4
  $region2: #{vit_forward.4} parent=0 // loop_pre_header
    _
  $region3: #{vit_forward.4} parent=0 // loop_header
    %s10 = sphi 0, %s14
    %p11 = scmp.ge.s32.totalorder %s10, 4
    %s20 = sphi 0, %s22
    %s23 = sphi 0, %s20
    %s24 = sphi 0, %s23
    %s40 = sphi 0, %s24
    %s44 = sphi 0, %s44
    %s46 = sphi 0, %s44
    %s47 = sphi 0, %s46
    %s61 = sphi 0, %s47
    %s65 = sphi 0, %s65
    %s67 = sphi 0, %s65
    %s68 = sphi 0, %s67
    %s82 = sphi 0, %s68
    %s86 = sphi 0, %s86
    %s88 = sphi 0, %s86
    %s89 = sphi 0, %s88
    %s103 = sphi 0, %s89
    %s109 = sphi 0, %s111
    %s112 = sphi 0, %s109
    %s113 = sphi 0, %s112
    %s129 = sphi 0, %s113
  $region4: #{vit_forward.4} parent=0 // loop_header_branch
    %13 = sbr.rel (%p11) target = $region8
  $region5: #{vit_forward.4} parent=0 // loop_body
    %s15 = ssub.s32 %s10, 1
    %s16 = ssub.s32 %s10, 2
    %s17 = sadd.s32 %s10, 1
    %s18 = ssub.s32 %s10, %s17
    %p19 = scmp.eq.s32.totalorder %s18, 0
    %s21 = sadd.s32 %s20, 1
    %s22 = scalar_select %p19, %s20, %s21
    %p25 = pneg %p19
    %p26 = scmp.eq.s32.totalorder %s10, 1
    %p27 = por %p25, %p26
    %p28 = scmp.ne.s32.totalorder %s20, %s23
    %p29 = scmp.eq.s32.totalorder %s10, 0
    %p30 = por %p28, %p29
    %p31 = scmp.ne.s32.totalorder %s20, %s23
    %p32 = scmp.eq.s32.totalorder %s15, 1
    %p33 = por %p31, %p32
    %p34 = scmp.ne.s32.totalorder %s23, %s24
    %p35 = scmp.eq.s32.totalorder %s15, 0
    %p36 = por %p34, %p35
    %p37 = scmp.ne.s32.totalorder %s23, %s24
    %p38 = scmp.eq.s32.totalorder %s16, 1
    %p39 = por %p37, %p38
    %p41 = scmp.ne.s32.totalorder %s24, %s40
    %p42 = scmp.eq.s32.totalorder %s16, 0
    %p43 = por %p41, %p42
    %s45 = sadd.s32 %s44, 1
    %p48 = scmp.eq.s32.totalorder %s10, 1
    %p49 = scmp.ne.s32.totalorder %s44, %s46
    %p50 = scmp.eq.s32.totalorder %s10, 0
    %p51 = por %p49, %p50
    %p52 = scmp.ne.s32.totalorder %s44, %s46
    %p53 = scmp.eq.s32.totalorder %s15, 1
    %p54 = por %p52, %p53
    %p55 = scmp.ne.s32.totalorder %s46, %s47
    %p56 = scmp.eq.s32.totalorder %s15, 0
    %p57 = por %p55, %p56
    %p58 = scmp.ne.s32.totalorder %s46, %s47
    %p59 = scmp.eq.s32.totalorder %s16, 1
    %p60 = por %p58, %p59
    %p62 = scmp.ne.s32.totalorder %s47, %s61
    %p63 = scmp.eq.s32.totalorder %s16, 0
    %p64 = por %p62, %p63
    %s66 = sadd.s32 %s65, 1
    %p69 = scmp.eq.s32.totalorder %s10, 1
    %p70 = scmp.ne.s32.totalorder %s65, %s67
    %p71 = scmp.eq.s32.totalorder %s10, 0
    %p72 = por %p70, %p71
    %p73 = scmp.ne.s32.totalorder %s65, %s67
    %p74 = scmp.eq.s32.totalorder %s15, 1
    %p75 = por %p73, %p74
    %p76 = scmp.ne.s32.totalorder %s67, %s68
    %p77 = scmp.eq.s32.totalorder %s15, 0
    %p78 = por %p76, %p77
    %p79 = scmp.ne.s32.totalorder %s67, %s68
    %p80 = scmp.eq.s32.totalorder %s16, 1
    %p81 = por %p79, %p80
    %p83 = scmp.ne.s32.totalorder %s68, %s82
    %p84 = scmp.eq.s32.totalorder %s16, 0
    %p85 = por %p83, %p84
    %s87 = sadd.s32 %s86, 1
    %p90 = scmp.eq.s32.totalorder %s10, 1
    %p91 = scmp.ne.s32.totalorder %s86, %s88
    %p92 = scmp.eq.s32.totalorder %s10, 0
    %p93 = por %p91, %p92
    %p94 = scmp.ne.s32.totalorder %s86, %s88
    %p95 = scmp.eq.s32.totalorder %s15, 1
    %p96 = por %p94, %p95
    %p97 = scmp.ne.s32.totalorder %s88, %s89
    %p98 = scmp.eq.s32.totalorder %s15, 0
    %p99 = por %p97, %p98
    %p100 = scmp.ne.s32.totalorder %s88, %s89
    %p101 = scmp.eq.s32.totalorder %s16, 1
    %p102 = por %p100, %p101
    %p104 = scmp.ne.s32.totalorder %s89, %s103
    %p105 = scmp.eq.s32.totalorder %s16, 0
    %p106 = por %p104, %p105
    %s107 = ssub.s32 %s10, %s17
    %p108 = scmp.eq.s32.totalorder %s107, 0
    %s110 = sadd.s32 %s109, 1
    %s111 = scalar_select %p108, %s109, %s110
    %p114 = pneg %p108
    %p115 = scmp.eq.s32.totalorder %s10, 1
    %p116 = por %p114, %p115
    %p117 = scmp.ne.s32.totalorder %s109, %s112
    %p118 = scmp.eq.s32.totalorder %s10, 0
    %p119 = por %p117, %p118
    %p120 = scmp.ne.s32.totalorder %s109, %s112
    %p121 = scmp.eq.s32.totalorder %s15, 1
    %p122 = por %p120, %p121
    %p123 = scmp.ne.s32.totalorder %s112, %s113
    %p124 = scmp.eq.s32.totalorder %s15, 0
    %p125 = por %p123, %p124
    %p126 = scmp.ne.s32.totalorder %s112, %s113
    %p127 = scmp.eq.s32.totalorder %s16, 1
    %p128 = por %p126, %p127
    %p130 = scmp.ne.s32.totalorder %s113, %s129
    %p131 = scmp.eq.s32.totalorder %s16, 0
    %p132 = por %p130, %p131
    %p133 = scmp.le.s32.totalorder 1, %s10
    %p134 = scmp.lt.s32.totalorder %s10, 3
    %p135 = pnand %p133, %p134
    %p136 = pneg %p135
    // Predicated region
    $region9: #{vit_forward.4} parent=5 // pred_check
      _
    $region10: #{vit_forward.4} parent=5 // pred_check_branch
      %138 = sbr.rel (%p135) target = $region12
    $region11: #{vit_forward.4} parent=5 // pred_region
      %s139 = ssub.s32 %s10, 1
      // Predicated region
      $region13: #{vit_forward.4} parent=11 // pred_check
        %p140 = pneg %p57
      $region14: #{vit_forward.4} parent=11 // pred_check_branch
        %142 = sbr.rel (%p140) target = $region16
      $region15: #{vit_forward.4} parent=11 // pred_region
        _
      $region16: #{vit_forward.4} parent=11 // pred_fallthru
        _
      // Predicated region
      $region17: #{vit_forward.4} parent=11 // pred_check
        %p143 = pneg %p78
      $region18: #{vit_forward.4} parent=11 // pred_check_branch
        %145 = sbr.rel (%p143) target = $region20
      $region19: #{vit_forward.4} parent=11 // pred_region
        _
      $region20: #{vit_forward.4} parent=11 // pred_fallthru
        _
      // Predicated region
      $region21: #{vit_forward.4} parent=11 // pred_check
        %p146 = pneg %p99
      $region22: #{vit_forward.4} parent=11 // pred_check_branch
        %148 = sbr.rel (%p146) target = $region24
      $region23: #{vit_forward.4} parent=11 // pred_region
        _
      $region24: #{vit_forward.4} parent=11 // pred_fallthru
        _
    $region12: #{vit_forward.4} parent=5 // pred_fallthru
      _
    %p149 = scmp.lt.s32.totalorder %s10, 2
    // Predicated region
    $region25: #{vit_forward.4} parent=5 // pred_check
      %p150 = pneg %p149
    $region26: #{vit_forward.4} parent=5 // pred_check_branch
      %152 = sbr.rel (%p150) target = $region28
    $region27: #{vit_forward.4} parent=5 // pred_region
      // Predicated region
      $region29: #{vit_forward.4} parent=27 // pred_check
        %p153 = pneg %p30
      $region30: #{vit_forward.4} parent=27 // pred_check_branch
        %155 = sbr.rel (%p153) target = $region32
      $region31: #{vit_forward.4} parent=27 // pred_region
        %p156 = scmp.lt.s32.totalorder %s10, 1
        %s157 = scalar_select %p156, %s10, 1
        %s158 = smul.addr %s157, 2
        %s159 = smul.addr %s158, 8
        %s160 = scalar_lea.vmem %s0, %s159
      $region32: #{vit_forward.4} parent=27 // pred_fallthru
        _
    $region28: #{vit_forward.4} parent=5 // pred_fallthru
      _
    %p161 = scmp.le.s32.totalorder 1, %s10
    %p162 = scmp.lt.s32.totalorder %s10, 3
    %p163 = pnand %p161, %p162
    %p164 = pneg %p163
    // Predicated region
    $region33: #{vit_forward.4} parent=5 // pred_check
      _
    $region34: #{vit_forward.4} parent=5 // pred_check_branch
      %166 = sbr.rel (%p163) target = $region36
    $region35: #{vit_forward.4} parent=5 // pred_region
      %s167 = ssub.s32 %s10, 1
      %p168 = scmp.lt.s32.totalorder %s15, 1
      %s169 = scalar_select %p168, %s15, 1
      %s170 = smul.addr %s169, 2
      %s171 = smul.addr %s170, 8
      %s172 = scalar_lea.vmem %s0, %s171
      %p173 = pneg %p36
      %p174 = pneg %p33
      %p175 = pneg %p57
      %p176 = pneg %p54
      %p177 = pneg %p78
      %p178 = pneg %p75
      %p179 = pneg %p99
      %p180 = pneg %p96
      %p181 = pneg %p125
      %p182 = pneg %p122
      %p183 = scmp.lt.s32.totalorder %s15, 1
      %s184 = scalar_select %p183, %s15, 1
      %s185 = smul.addr %s184, 2
      %s186 = smul.addr %s185, 8
      %s187 = scalar_lea.vmem %s4, %s186
      %p188 = scmp.lt.s32.totalorder %s15, 1
      %s189 = scalar_select %p188, %s15, 1
      %s190 = smul.addr %s189, 2
      %s191 = smul.addr %s190, 8
      %s192 = scalar_lea.vmem %s0, %s191
      %p193 = scmp.lt.s32.totalorder %s15, 1
      %s194 = scalar_select %p193, %s15, 1
      %s195 = smul.addr %s194, 2
      %s196 = smul.addr %s195, 8
      %s197 = scalar_lea.vmem %s4, %s196
      %v198 = vld [vmem:[%s192] sm:$0xff]
      %v199 = vld [vmem:[%s192 + $0x8] sm:$0xff]
      %v200 = vld [vmem:[%s1] sm:$0xff]
      %v201 = vld [vmem:[%s1 + $0x8] sm:$0xff]
      %v202 = vld [vmem:[%s1 + $0x10] sm:$0xff]
      %v203 = vld [vmem:[%s1 + $0x18] sm:$0xff]
      %v204 = vld [vmem:[%s1 + $0x20] sm:$0xff]
      %v205 = vld [vmem:[%s1 + $0x28] sm:$0xff]
      %v206 = vld [vmem:[%s2] sm:$0x1]
      %v208 = vperm.slane %v206, 0
      %vm210 = vcmask 392192
      %v212 = vsel %vm210, %v198, 0
      %v215 = vsel %vm210, %v199, 0
      %217 = vmatpush.msra.mxu0 0.0
      %218 = vmatpush.msra.mxu0 0.0
      %219 = vmatpush.msra.mxu0 0.0
      %220 = vmatpush.msra.mxu0 0.0
      %221 = vmatpush.msra.mxu0 0.0
      %222 = vmatpush.msra.mxu0 0.0
      %223 = vmatpush.msra.mxu0 0.0
      %224 = vmatpush.msra.mxu0 0.0
      %225 = vmatpush.msra.mxu0 0.0
      %226 = vmatpush.msra.mxu0 0.0
      %227 = vmatpush.msra.mxu0 %v205
      %228 = vmatpush.msra.mxu0 %v204
      %229 = vmatpush.msra.mxu0 %v203
      %230 = vmatpush.msra.mxu0 %v202
      %231 = vmatpush.msra.mxu0 %v201
      %232 = vmatpush.msra.mxu0 %v200
      %233 = vmatmul.f32.gmra.mxu0 %v212
      %v234 = vpop.f32.mrf.mxu0
      %v235 = vadd.f32 %v208, %v234
      %236 = vmatmul.f32.gmra.mxu0 %v215
      %v237 = vpop.f32.mrf.mxu0
      %v238 = vadd.f32 %v208, %v237
      %239 = vdwg.mxu0
      %v240 = vld [vmem:[%s3] sm:$0xff]
      %v241 = vld [vmem:[%s3 + $0x8] sm:$0xff]
      %v242 = vadd.f32 %v235, %v240
      %v243 = vadd.f32 %v238, %v241
      %244 = vst.msk [vmem:[%s197] sm:$0xff] %vm210, %v242
      %245 = vst.msk [vmem:[%s197 + $0x8] sm:$0xff] %vm210, %v243
      %p246 = scmp.lt.s32.totalorder %s15, 1
      %s247 = scalar_select %p246, %s15, 1
      %s248 = smul.addr %s247, 2
      %s249 = smul.addr %s248, 8
      %s250 = scalar_lea.vmem %s4, %s249
      // Predicated region
      $region37: #{vit_forward.4} parent=35 // pred_check
        %p251 = pneg %p122
      $region38: #{vit_forward.4} parent=35 // pred_check_branch
        %253 = sbr.rel (%p251) target = $region40
      $region39: #{vit_forward.4} parent=35 // pred_region
        _
      $region40: #{vit_forward.4} parent=35 // pred_fallthru
        _
    $region36: #{vit_forward.4} parent=5 // pred_fallthru
      _
    %p254 = scmp.le.s32.totalorder 2, %s10
    // Predicated region
    $region41: #{vit_forward.4} parent=5 // pred_check
      %p255 = pneg %p254
    $region42: #{vit_forward.4} parent=5 // pred_check_branch
      %257 = sbr.rel (%p255) target = $region44
    $region43: #{vit_forward.4} parent=5 // pred_region
      %s258 = ssub.s32 %s10, 2
      // Predicated region
      $region45: #{vit_forward.4} parent=43 // pred_check
        %p259 = pneg %p128
      $region46: #{vit_forward.4} parent=43 // pred_check_branch
        %261 = sbr.rel (%p259) target = $region48
      $region47: #{vit_forward.4} parent=43 // pred_region
        %p262 = scmp.lt.s32.totalorder %s16, 1
        %s263 = scalar_select %p262, %s16, 1
        %s264 = smul.addr %s263, 2
        %s265 = smul.addr %s264, 8
        %s266 = scalar_lea.vmem %s4, %s265
      $region48: #{vit_forward.4} parent=43 // pred_fallthru
        _
    $region44: #{vit_forward.4} parent=5 // pred_fallthru
      _
  $region6: #{vit_forward.4} parent=0 // loop_footer
    %s14 = sadd.s32 1, %s10
  $region7: #{vit_forward.4} parent=0 // loop_footer_branch
    %9 = sbr.rel target = $region3
  $region8: #{vit_forward.4} parent=0 // loop_exit
    _

// kernel: vit_forward.7
$region0: #{vit_forward.7}
  #allocation0 [shape = 'u32[]', space=smem, size = 0x4, offset = 0x4, fixed_abs, tag = 'smem constant byte address 0x4 - core index']
  #allocation1 [shape = 'u32[72,128]{1,0:T(1,128)}', space=vmem, size = 0x9000, scoped, tag = 'internal scratch']
  %s0 = inlined_call_operand.vmem [shape: f32[2,48], index: 0, kind: input, shape index: {}]
  %s1 = inlined_call_operand.vmem [shape: f32[1,48], index: 1, kind: input, shape index: {}]
  %s2 = inlined_call_operand.vmem [shape: f32[1,48], index: 2, kind: input, shape index: {}]
  %s3 = inlined_call_operand.vmem [shape: f32[48,128], index: 3, kind: input, shape index: {}]
  %s4 = inlined_call_operand.vmem [shape: f32[1,128], index: 4, kind: input, shape index: {}]
  %s5 = inlined_call_operand.hbm [shape: f32[2,128], index: 5, kind: output, shape index: {}]
  %s6 = sld [smem:[#allocation0]]
  $region30: #{vit_forward.7} parent=0
    _
  %s8 = ssub.s32 1, %s6
  %s9 = scalar_select 0, %s8, %s6
  $region1: #{vit_forward.7} parent=0
    #allocation2 [shape = 'u8[1024]{0}', space=vmem, size = 0x400, scoped, tag = 'output window, operand 0, single buffered']
    #allocation3 [shape = 's32[1]{0}', space=sflag, size = 0x4, scoped, tag = 'scoped memory for vit_forward.7']
    %10 = vsyncpa [#allocation3], 0
    // Predicated region
    $region2: #{vit_forward.7} parent=1 // pred_check
      _
    $region3: #{vit_forward.7} parent=1 // pred_check_branch
      %12 = sbr.rel (0) target = $region5
    $region4: #{vit_forward.7} parent=1 // pred_region
      _
    $region5: #{vit_forward.7} parent=1 // pred_fallthru
      _
    // Predicated region
    $region6: #{vit_forward.7} parent=1 // pred_check
      _
    $region7: #{vit_forward.7} parent=1 // pred_check_branch
      %14 = sbr.rel (0) target = $region9
    $region8: #{vit_forward.7} parent=1 // pred_region
      _
    $region9: #{vit_forward.7} parent=1 // pred_fallthru
      _
    // Predicated region
    $region10: #{vit_forward.7} parent=1 // pred_check
      _
    $region11: #{vit_forward.7} parent=1 // pred_check_branch
      %16 = sbr.rel (0) target = $region13
    $region12: #{vit_forward.7} parent=1 // pred_region
      _
    $region13: #{vit_forward.7} parent=1 // pred_fallthru
      _
    // Predicated region
    $region14: #{vit_forward.7} parent=1 // pred_check
      _
    $region15: #{vit_forward.7} parent=1 // pred_check_branch
      %18 = sbr.rel (0) target = $region17
    $region16: #{vit_forward.7} parent=1 // pred_region
      _
    $region17: #{vit_forward.7} parent=1 // pred_fallthru
      _
    // Predicated region
    $region18: #{vit_forward.7} parent=1 // pred_check
      _
    $region19: #{vit_forward.7} parent=1 // pred_check_branch
      %20 = sbr.rel (0) target = $region21
    $region20: #{vit_forward.7} parent=1 // pred_region
      _
    $region21: #{vit_forward.7} parent=1 // pred_fallthru
      _
    %v21 = vld [vmem:[%s0] sm:$0x3]
    %v22 = vld [vmem:[%s1] sm:$0x1]
    %v23 = vld [vmem:[%s2] sm:$0x1]
    %vm24 = vcmask 386048
    %v25 = vsel %vm24, %v21, 0.0
    %26 = vadd.xlane.f32.xlu0 %v25
    %v27 = vpop.xlane.xlu0 %26
    %v28 = vrcp.pop 48.0
    %v29 = vmul.f32 48.0, %v28
    %v30 = vsub.f32 1.0, %v29
    %v31 = vmul.f32 %v28, %v30
    %v32 = vadd.f32 %v28, %v31
    %vm33 = vweird.f32 %v28
    %v34 = vsel %vm33, %v28, %v32
    %v35 = vmul.f32 %v27, %v34
    %v36 = vsub.f32 %v21, %v35
    %v37 = vmul.f32 %v36, %v36
    %v38 = vsel %vm24, %v37, 0.0
    %39 = vadd.xlane.f32.xlu0 %v38
    %v40 = vpop.xlane.xlu0 %39
    %v41 = vmul.f32 %v40, %v34
    %v42 = vadd.f32 %v41, 1e-05
    %v43 = vrsqrt.pop %v42
    %v44 = vmul.f32 %v43, %v42
    %v45 = vmul.f32 %v44, %v43
    %v46 = vmul.f32 0.5, %v45
    %v47 = vsub.f32 1.5, %v46
    %v48 = vmul.f32 %v43, %v47
    %vm49 = vweird.f32 %v42
    %vm50 = vweird.f32 %v43
    %vm51 = vmor %vm49, %vm50
    %v52 = vsel %vm51, %v43, %v48
    %v53 = vmul.f32 %v36, %v52
    %v55 = vperm.slane %v22, 0
    %v57 = vmul.f32 %v53, %v55
    %v59 = vperm.slane %v23, 0
    %v61 = vadd.f32 %v57, %v59
    %v62 = vld [vmem:[%s3] sm:$0xff]
    %v63 = vld [vmem:[%s3 + $0x8] sm:$0xff]
    %v64 = vld [vmem:[%s3 + $0x10] sm:$0xff]
    %v65 = vld [vmem:[%s3 + $0x18] sm:$0xff]
    %v66 = vld [vmem:[%s3 + $0x20] sm:$0xff]
    %v67 = vld [vmem:[%s3 + $0x28] sm:$0xff]
    %v68 = vld [vmem:[%s4] sm:$0x1]
    %v70 = vperm.slane %v68, 0
    %vm72 = vcmask 392192
    %v74 = vsel %vm72, %v61, 0
    %76 = vmatpush.msra.mxu0 0.0
    %77 = vmatpush.msra.mxu0 0.0
    %78 = vmatpush.msra.mxu0 0.0
    %79 = vmatpush.msra.mxu0 0.0
    %80 = vmatpush.msra.mxu0 0.0
    %81 = vmatpush.msra.mxu0 0.0
    %82 = vmatpush.msra.mxu0 0.0
    %83 = vmatpush.msra.mxu0 0.0
    %84 = vmatpush.msra.mxu0 0.0
    %85 = vmatpush.msra.mxu0 0.0
    %86 = vmatpush.msra.mxu0 %v67
    %87 = vmatpush.msra.mxu0 %v66
    %88 = vmatpush.msra.mxu0 %v65
    %89 = vmatpush.msra.mxu0 %v64
    %90 = vmatpush.msra.mxu0 %v63
    %91 = vmatpush.msra.mxu0 %v62
    %92 = vmatmul.f32.gmra.mxu0 %v74
    %v93 = vpop.f32.mrf.mxu0
    %v94 = vadd.f32 %v70, %v93
    %95 = vdwg.mxu0
    %96 = vst [vmem:[#allocation2] sm:$0x3] %v94
    // Predicated region
    $region22: #{vit_forward.7} parent=1 // pred_check
      _
    $region23: #{vit_forward.7} parent=1 // pred_check_branch
      %98 = sbr.rel (0) target = $region25
    $region24: #{vit_forward.7} parent=1 // pred_region
      %100 = vsyncadd [#allocation3], 0
      %s102 = sshll.u32 [#allocation2], 4
      %s103 = int_to_ptr.vmem [resolvable:$true] %s102
      %s104 = sshll.u32 %s5, 4
      %s105 = int_to_ptr.hbm [resolvable:$true] %s104
      %107 = dma.vmem_to_hbm [thread:$0]  %s103, 32, %s105, [#allocation3]
    $region25: #{vit_forward.7} parent=1 // pred_fallthru
      _
    // Predicated region
    $region26: #{vit_forward.7} parent=1 // pred_check
      _
    $region27: #{vit_forward.7} parent=1 // pred_check_branch
      %109 = sbr.rel (0) target = $region29
    $region28: #{vit_forward.7} parent=1 // pred_region
      %111 = dma.done [#allocation3], 32
    $region29: #{vit_forward.7} parent=1 // pred_fallthru
      _
    %112 = vsyncpa [#allocation3], 1

// kernel: vit_forward.5
$region0: #{vit_forward.5}
  #allocation0 [shape = 'u32[]', space=smem, size = 0x4, offset = 0x4, fixed_abs, tag = 'smem constant byte address 0x4 - core index']
  #allocation1 [shape = 'u32[72,128]{1,0:T(1,128)}', space=vmem, size = 0x9000, scoped, tag = 'internal scratch']
  %s0 = inlined_call_operand.vmem [shape: f32[2,17,48], index: 0, kind: input, shape index: {}]
  %s1 = inlined_call_operand.vmem [shape: f32[1,48], index: 1, kind: input, shape index: {}]
  %s2 = inlined_call_operand.vmem [shape: f32[1,48], index: 2, kind: input, shape index: {}]
  %s3 = inlined_call_operand.vmem [shape: f32[48,144], index: 3, kind: input, shape index: {}]
  %s4 = inlined_call_operand.vmem [shape: f32[1,144], index: 4, kind: input, shape index: {}]
  %s5 = inlined_call_operand.vmem [shape: f32[48,48], index: 5, kind: input, shape index: {}]
  %s6 = inlined_call_operand.vmem [shape: f32[1,48], index: 6, kind: input, shape index: {}]
  %s7 = inlined_call_operand.vmem [shape: f32[1,48], index: 7, kind: input, shape index: {}]
  %s8 = inlined_call_operand.vmem [shape: f32[1,48], index: 8, kind: input, shape index: {}]
  %s9 = inlined_call_operand.vmem [shape: f32[48,192], index: 9, kind: input, shape index: {}]
  %s10 = inlined_call_operand.vmem [shape: f32[1,192], index: 10, kind: input, shape index: {}]
  %s11 = inlined_call_operand.vmem [shape: f32[192,48], index: 11, kind: input, shape index: {}]
  %s12 = inlined_call_operand.vmem [shape: f32[1,48], index: 12, kind: input, shape index: {}]
  %s13 = inlined_call_operand.vmem [shape: f32[2,17,48], index: 13, kind: output, shape index: {}]
  %s14 = sld [smem:[#allocation0]]
  $region85: #{vit_forward.5} parent=0
    _
  %s16 = ssub.s32 1, %s14
  %s17 = scalar_select 0, %s16, %s14
  loop: start=0, step=1, limit=4
  $region2: #{vit_forward.5} parent=0 // loop_pre_header
    _
  $region3: #{vit_forward.5} parent=0 // loop_header
    %s19 = sphi 0, %s23
    %p20 = scmp.ge.s32.totalorder %s19, 4
    %s29 = sphi 0, %s31
    %s32 = sphi 0, %s29
    %s33 = sphi 0, %s32
    %s49 = sphi 0, %s33
    %s53 = sphi 0, %s53
    %s55 = sphi 0, %s53
    %s56 = sphi 0, %s55
    %s70 = sphi 0, %s56
    %s74 = sphi 0, %s74
    %s76 = sphi 0, %s74
    %s77 = sphi 0, %s76
    %s91 = sphi 0, %s77
    %s95 = sphi 0, %s95
    %s97 = sphi 0, %s95
    %s98 = sphi 0, %s97
    %s112 = sphi 0, %s98
    %s116 = sphi 0, %s116
    %s118 = sphi 0, %s116
    %s119 = sphi 0, %s118
    %s133 = sphi 0, %s119
    %s137 = sphi 0, %s137
    %s139 = sphi 0, %s137
    %s140 = sphi 0, %s139
    %s154 = sphi 0, %s140
    %s158 = sphi 0, %s158
    %s160 = sphi 0, %s158
    %s161 = sphi 0, %s160
    %s175 = sphi 0, %s161
    %s179 = sphi 0, %s179
    %s181 = sphi 0, %s179
    %s182 = sphi 0, %s181
    %s196 = sphi 0, %s182
    %s200 = sphi 0, %s200
    %s202 = sphi 0, %s200
    %s203 = sphi 0, %s202
    %s217 = sphi 0, %s203
    %s221 = sphi 0, %s221
    %s223 = sphi 0, %s221
    %s224 = sphi 0, %s223
    %s238 = sphi 0, %s224
    %s242 = sphi 0, %s242
    %s244 = sphi 0, %s242
    %s245 = sphi 0, %s244
    %s259 = sphi 0, %s245
    %s263 = sphi 0, %s263
    %s265 = sphi 0, %s263
    %s266 = sphi 0, %s265
    %s280 = sphi 0, %s266
    %s284 = sphi 0, %s284
    %s286 = sphi 0, %s284
    %s287 = sphi 0, %s286
    %s301 = sphi 0, %s287
    %s307 = sphi 0, %s309
    %s310 = sphi 0, %s307
    %s311 = sphi 0, %s310
    %s327 = sphi 0, %s311
  $region4: #{vit_forward.5} parent=0 // loop_header_branch
    %22 = sbr.rel (%p20) target = $region8
  $region5: #{vit_forward.5} parent=0 // loop_body
    %s24 = ssub.s32 %s19, 1
    %s25 = ssub.s32 %s19, 2
    %s26 = sadd.s32 %s19, 1
    %s27 = ssub.s32 %s19, %s26
    %p28 = scmp.eq.s32.totalorder %s27, 0
    %s30 = sadd.s32 %s29, 1
    %s31 = scalar_select %p28, %s29, %s30
    %p34 = pneg %p28
    %p35 = scmp.eq.s32.totalorder %s19, 1
    %p36 = por %p34, %p35
    %p37 = scmp.ne.s32.totalorder %s29, %s32
    %p38 = scmp.eq.s32.totalorder %s19, 0
    %p39 = por %p37, %p38
    %p40 = scmp.ne.s32.totalorder %s29, %s32
    %p41 = scmp.eq.s32.totalorder %s24, 1
    %p42 = por %p40, %p41
    %p43 = scmp.ne.s32.totalorder %s32, %s33
    %p44 = scmp.eq.s32.totalorder %s24, 0
    %p45 = por %p43, %p44
    %p46 = scmp.ne.s32.totalorder %s32, %s33
    %p47 = scmp.eq.s32.totalorder %s25, 1
    %p48 = por %p46, %p47
    %p50 = scmp.ne.s32.totalorder %s33, %s49
    %p51 = scmp.eq.s32.totalorder %s25, 0
    %p52 = por %p50, %p51
    %s54 = sadd.s32 %s53, 1
    %p57 = scmp.eq.s32.totalorder %s19, 1
    %p58 = scmp.ne.s32.totalorder %s53, %s55
    %p59 = scmp.eq.s32.totalorder %s19, 0
    %p60 = por %p58, %p59
    %p61 = scmp.ne.s32.totalorder %s53, %s55
    %p62 = scmp.eq.s32.totalorder %s24, 1
    %p63 = por %p61, %p62
    %p64 = scmp.ne.s32.totalorder %s55, %s56
    %p65 = scmp.eq.s32.totalorder %s24, 0
    %p66 = por %p64, %p65
    %p67 = scmp.ne.s32.totalorder %s55, %s56
    %p68 = scmp.eq.s32.totalorder %s25, 1
    %p69 = por %p67, %p68
    %p71 = scmp.ne.s32.totalorder %s56, %s70
    %p72 = scmp.eq.s32.totalorder %s25, 0
    %p73 = por %p71, %p72
    %s75 = sadd.s32 %s74, 1
    %p78 = scmp.eq.s32.totalorder %s19, 1
    %p79 = scmp.ne.s32.totalorder %s74, %s76
    %p80 = scmp.eq.s32.totalorder %s19, 0
    %p81 = por %p79, %p80
    %p82 = scmp.ne.s32.totalorder %s74, %s76
    %p83 = scmp.eq.s32.totalorder %s24, 1
    %p84 = por %p82, %p83
    %p85 = scmp.ne.s32.totalorder %s76, %s77
    %p86 = scmp.eq.s32.totalorder %s24, 0
    %p87 = por %p85, %p86
    %p88 = scmp.ne.s32.totalorder %s76, %s77
    %p89 = scmp.eq.s32.totalorder %s25, 1
    %p90 = por %p88, %p89
    %p92 = scmp.ne.s32.totalorder %s77, %s91
    %p93 = scmp.eq.s32.totalorder %s25, 0
    %p94 = por %p92, %p93
    %s96 = sadd.s32 %s95, 1
    %p99 = scmp.eq.s32.totalorder %s19, 1
    %p100 = scmp.ne.s32.totalorder %s95, %s97
    %p101 = scmp.eq.s32.totalorder %s19, 0
    %p102 = por %p100, %p101
    %p103 = scmp.ne.s32.totalorder %s95, %s97
    %p104 = scmp.eq.s32.totalorder %s24, 1
    %p105 = por %p103, %p104
    %p106 = scmp.ne.s32.totalorder %s97, %s98
    %p107 = scmp.eq.s32.totalorder %s24, 0
    %p108 = por %p106, %p107
    %p109 = scmp.ne.s32.totalorder %s97, %s98
    %p110 = scmp.eq.s32.totalorder %s25, 1
    %p111 = por %p109, %p110
    %p113 = scmp.ne.s32.totalorder %s98, %s112
    %p114 = scmp.eq.s32.totalorder %s25, 0
    %p115 = por %p113, %p114
    %s117 = sadd.s32 %s116, 1
    %p120 = scmp.eq.s32.totalorder %s19, 1
    %p121 = scmp.ne.s32.totalorder %s116, %s118
    %p122 = scmp.eq.s32.totalorder %s19, 0
    %p123 = por %p121, %p122
    %p124 = scmp.ne.s32.totalorder %s116, %s118
    %p125 = scmp.eq.s32.totalorder %s24, 1
    %p126 = por %p124, %p125
    %p127 = scmp.ne.s32.totalorder %s118, %s119
    %p128 = scmp.eq.s32.totalorder %s24, 0
    %p129 = por %p127, %p128
    %p130 = scmp.ne.s32.totalorder %s118, %s119
    %p131 = scmp.eq.s32.totalorder %s25, 1
    %p132 = por %p130, %p131
    %p134 = scmp.ne.s32.totalorder %s119, %s133
    %p135 = scmp.eq.s32.totalorder %s25, 0
    %p136 = por %p134, %p135
    %s138 = sadd.s32 %s137, 1
    %p141 = scmp.eq.s32.totalorder %s19, 1
    %p142 = scmp.ne.s32.totalorder %s137, %s139
    %p143 = scmp.eq.s32.totalorder %s19, 0
    %p144 = por %p142, %p143
    %p145 = scmp.ne.s32.totalorder %s137, %s139
    %p146 = scmp.eq.s32.totalorder %s24, 1
    %p147 = por %p145, %p146
    %p148 = scmp.ne.s32.totalorder %s139, %s140
    %p149 = scmp.eq.s32.totalorder %s24, 0
    %p150 = por %p148, %p149
    %p151 = scmp.ne.s32.totalorder %s139, %s140
    %p152 = scmp.eq.s32.totalorder %s25, 1
    %p153 = por %p151, %p152
    %p155 = scmp.ne.s32.totalorder %s140, %s154
    %p156 = scmp.eq.s32.totalorder %s25, 0
    %p157 = por %p155, %p156
    %s159 = sadd.s32 %s158, 1
    %p162 = scmp.eq.s32.totalorder %s19, 1
    %p163 = scmp.ne.s32.totalorder %s158, %s160
    %p164 = scmp.eq.s32.totalorder %s19, 0
    %p165 = por %p163, %p164
    %p166 = scmp.ne.s32.totalorder %s158, %s160
    %p167 = scmp.eq.s32.totalorder %s24, 1
    %p168 = por %p166, %p167
    %p169 = scmp.ne.s32.totalorder %s160, %s161
    %p170 = scmp.eq.s32.totalorder %s24, 0
    %p171 = por %p169, %p170
    %p172 = scmp.ne.s32.totalorder %s160, %s161
    %p173 = scmp.eq.s32.totalorder %s25, 1
    %p174 = por %p172, %p173
    %p176 = scmp.ne.s32.totalorder %s161, %s175
    %p177 = scmp.eq.s32.totalorder %s25, 0
    %p178 = por %p176, %p177
    %s180 = sadd.s32 %s179, 1
    %p183 = scmp.eq.s32.totalorder %s19, 1
    %p184 = scmp.ne.s32.totalorder %s179, %s181
    %p185 = scmp.eq.s32.totalorder %s19, 0
    %p186 = por %p184, %p185
    %p187 = scmp.ne.s32.totalorder %s179, %s181
    %p188 = scmp.eq.s32.totalorder %s24, 1
    %p189 = por %p187, %p188
    %p190 = scmp.ne.s32.totalorder %s181, %s182
    %p191 = scmp.eq.s32.totalorder %s24, 0
    %p192 = por %p190, %p191
    %p193 = scmp.ne.s32.totalorder %s181, %s182
    %p194 = scmp.eq.s32.totalorder %s25, 1
    %p195 = por %p193, %p194
    %p197 = scmp.ne.s32.totalorder %s182, %s196
    %p198 = scmp.eq.s32.totalorder %s25, 0
    %p199 = por %p197, %p198
    %s201 = sadd.s32 %s200, 1
    %p204 = scmp.eq.s32.totalorder %s19, 1
    %p205 = scmp.ne.s32.totalorder %s200, %s202
    %p206 = scmp.eq.s32.totalorder %s19, 0
    %p207 = por %p205, %p206
    %p208 = scmp.ne.s32.totalorder %s200, %s202
    %p209 = scmp.eq.s32.totalorder %s24, 1
    %p210 = por %p208, %p209
    %p211 = scmp.ne.s32.totalorder %s202, %s203
    %p212 = scmp.eq.s32.totalorder %s24, 0
    %p213 = por %p211, %p212
    %p214 = scmp.ne.s32.totalorder %s202, %s203
    %p215 = scmp.eq.s32.totalorder %s25, 1
    %p216 = por %p214, %p215
    %p218 = scmp.ne.s32.totalorder %s203, %s217
    %p219 = scmp.eq.s32.totalorder %s25, 0
    %p220 = por %p218, %p219
    %s222 = sadd.s32 %s221, 1
    %p225 = scmp.eq.s32.totalorder %s19, 1
    %p226 = scmp.ne.s32.totalorder %s221, %s223
    %p227 = scmp.eq.s32.totalorder %s19, 0
    %p228 = por %p226, %p227
    %p229 = scmp.ne.s32.totalorder %s221, %s223
    %p230 = scmp.eq.s32.totalorder %s24, 1
    %p231 = por %p229, %p230
    %p232 = scmp.ne.s32.totalorder %s223, %s224
    %p233 = scmp.eq.s32.totalorder %s24, 0
    %p234 = por %p232, %p233
    %p235 = scmp.ne.s32.totalorder %s223, %s224
    %p236 = scmp.eq.s32.totalorder %s25, 1
    %p237 = por %p235, %p236
    %p239 = scmp.ne.s32.totalorder %s224, %s238
    %p240 = scmp.eq.s32.totalorder %s25, 0
    %p241 = por %p239, %p240
    %s243 = sadd.s32 %s242, 1
    %p246 = scmp.eq.s32.totalorder %s19, 1
    %p247 = scmp.ne.s32.totalorder %s242, %s244
    %p248 = scmp.eq.s32.totalorder %s19, 0
    %p249 = por %p247, %p248
    %p250 = scmp.ne.s32.totalorder %s242, %s244
    %p251 = scmp.eq.s32.totalorder %s24, 1
    %p252 = por %p250, %p251
    %p253 = scmp.ne.s32.totalorder %s244, %s245
    %p254 = scmp.eq.s32.totalorder %s24, 0
    %p255 = por %p253, %p254
    %p256 = scmp.ne.s32.totalorder %s244, %s245
    %p257 = scmp.eq.s32.totalorder %s25, 1
    %p258 = por %p256, %p257
    %p260 = scmp.ne.s32.totalorder %s245, %s259
    %p261 = scmp.eq.s32.totalorder %s25, 0
    %p262 = por %p260, %p261
    %s264 = sadd.s32 %s263, 1
    %p267 = scmp.eq.s32.totalorder %s19, 1
    %p268 = scmp.ne.s32.totalorder %s263, %s265
    %p269 = scmp.eq.s32.totalorder %s19, 0
    %p270 = por %p268, %p269
    %p271 = scmp.ne.s32.totalorder %s263, %s265
    %p272 = scmp.eq.s32.totalorder %s24, 1
    %p273 = por %p271, %p272
    %p274 = scmp.ne.s32.totalorder %s265, %s266
    %p275 = scmp.eq.s32.totalorder %s24, 0
    %p276 = por %p274, %p275
    %p277 = scmp.ne.s32.totalorder %s265, %s266
    %p278 = scmp.eq.s32.totalorder %s25, 1
    %p279 = por %p277, %p278
    %p281 = scmp.ne.s32.totalorder %s266, %s280
    %p282 = scmp.eq.s32.totalorder %s25, 0
    %p283 = por %p281, %p282
    %s285 = sadd.s32 %s284, 1
    %p288 = scmp.eq.s32.totalorder %s19, 1
    %p289 = scmp.ne.s32.totalorder %s284, %s286
    %p290 = scmp.eq.s32.totalorder %s19, 0
    %p291 = por %p289, %p290
    %p292 = scmp.ne.s32.totalorder %s284, %s286
    %p293 = scmp.eq.s32.totalorder %s24, 1
    %p294 = por %p292, %p293
    %p295 = scmp.ne.s32.totalorder %s286, %s287
    %p296 = scmp.eq.s32.totalorder %s24, 0
    %p297 = por %p295, %p296
    %p298 = scmp.ne.s32.totalorder %s286, %s287
    %p299 = scmp.eq.s32.totalorder %s25, 1
    %p300 = por %p298, %p299
    %p302 = scmp.ne.s32.totalorder %s287, %s301
    %p303 = scmp.eq.s32.totalorder %s25, 0
    %p304 = por %p302, %p303
    %s305 = ssub.s32 %s19, %s26
    %p306 = scmp.eq.s32.totalorder %s305, 0
    %s308 = sadd.s32 %s307, 1
    %s309 = scalar_select %p306, %s307, %s308
    %p312 = pneg %p306
    %p313 = scmp.eq.s32.totalorder %s19, 1
    %p314 = por %p312, %p313
    %p315 = scmp.ne.s32.totalorder %s307, %s310
    %p316 = scmp.eq.s32.totalorder %s19, 0
    %p317 = por %p315, %p316
    %p318 = scmp.ne.s32.totalorder %s307, %s310
    %p319 = scmp.eq.s32.totalorder %s24, 1
    %p320 = por %p318, %p319
    %p321 = scmp.ne.s32.totalorder %s310, %s311
    %p322 = scmp.eq.s32.totalorder %s24, 0
    %p323 = por %p321, %p322
    %p324 = scmp.ne.s32.totalorder %s310, %s311
    %p325 = scmp.eq.s32.totalorder %s25, 1
    %p326 = por %p324, %p325
    %p328 = scmp.ne.s32.totalorder %s311, %s327
    %p329 = scmp.eq.s32.totalorder %s25, 0
    %p330 = por %p328, %p329
    %p331 = scmp.le.s32.totalorder 1, %s19
    %p332 = scmp.lt.s32.totalorder %s19, 3
    %p333 = pnand %p331, %p332
    %p334 = pneg %p333
    // Predicated region
    $region9: #{vit_forward.5} parent=5 // pred_check
      _
    $region10: #{vit_forward.5} parent=5 // pred_check_branch
      %336 = sbr.rel (%p333) target = $region12
    $region11: #{vit_forward.5} parent=5 // pred_region
      %s337 = ssub.s32 %s19, 1
      // Predicated region
      $region13: #{vit_forward.5} parent=11 // pred_check
        %p338 = pneg %p66
      $region14: #{vit_forward.5} parent=11 // pred_check_branch
        %340 = sbr.rel (%p338) target = $region16
      $region15: #{vit_forward.5} parent=11 // pred_region
        _
      $region16: #{vit_forward.5} parent=11 // pred_fallthru
        _
      // Predicated region
      $region17: #{vit_forward.5} parent=11 // pred_check
        %p341 = pneg %p87
      $region18: #{vit_forward.5} parent=11 // pred_check_branch
        %343 = sbr.rel (%p341) target = $region20
      $region19: #{vit_forward.5} parent=11 // pred_region
        _
      $region20: #{vit_forward.5} parent=11 // pred_fallthru
        _
      // Predicated region
      $region21: #{vit_forward.5} parent=11 // pred_check
        %p344 = pneg %p108
      $region22: #{vit_forward.5} parent=11 // pred_check_branch
        %346 = sbr.rel (%p344) target = $region24
      $region23: #{vit_forward.5} parent=11 // pred_region
        _
      $region24: #{vit_forward.5} parent=11 // pred_fallthru
        _
      // Predicated region
      $region25: #{vit_forward.5} parent=11 // pred_check
        %p347 = pneg %p129
      $region26: #{vit_forward.5} parent=11 // pred_check_branch
        %349 = sbr.rel (%p347) target = $region28
      $region27: #{vit_forward.5} parent=11 // pred_region
        _
      $region28: #{vit_forward.5} parent=11 // pred_fallthru
        _
      // Predicated region
      $region29: #{vit_forward.5} parent=11 // pred_check
        %p350 = pneg %p150
      $region30: #{vit_forward.5} parent=11 // pred_check_branch
        %352 = sbr.rel (%p350) target = $region32
      $region31: #{vit_forward.5} parent=11 // pred_region
        _
      $region32: #{vit_forward.5} parent=11 // pred_fallthru
        _
      // Predicated region
      $region33: #{vit_forward.5} parent=11 // pred_check
        %p353 = pneg %p171
      $region34: #{vit_forward.5} parent=11 // pred_check_branch
        %355 = sbr.rel (%p353) target = $region36
      $region35: #{vit_forward.5} parent=11 // pred_region
        _
      $region36: #{vit_forward.5} parent=11 // pred_fallthru
        _
      // Predicated region
      $region37: #{vit_forward.5} parent=11 // pred_check
        %p356 = pneg %p192
      $region38: #{vit_forward.5} parent=11 // pred_check_branch
        %358 = sbr.rel (%p356) target = $region40
      $region39: #{vit_forward.5} parent=11 // pred_region
        _
      $region40: #{vit_forward.5} parent=11 // pred_fallthru
        _
      // Predicated region
      $region41: #{vit_forward.5} parent=11 // pred_check
        %p359 = pneg %p213
      $region42: #{vit_forward.5} parent=11 // pred_check_branch
        %361 = sbr.rel (%p359) target = $region44
      $region43: #{vit_forward.5} parent=11 // pred_region
        _
      $region44: #{vit_forward.5} parent=11 // pred_fallthru
        _
      // Predicated region
      $region45: #{vit_forward.5} parent=11 // pred_check
        %p362 = pneg %p234
      $region46: #{vit_forward.5} parent=11 // pred_check_branch
        %364 = sbr.rel (%p362) target = $region48
      $region47: #{vit_forward.5} parent=11 // pred_region
        _
      $region48: #{vit_forward.5} parent=11 // pred_fallthru
        _
      // Predicated region
      $region49: #{vit_forward.5} parent=11 // pred_check
        %p365 = pneg %p255
      $region50: #{vit_forward.5} parent=11 // pred_check_branch
        %367 = sbr.rel (%p365) target = $region52
      $region51: #{vit_forward.5} parent=11 // pred_region
        _
      $region52: #{vit_forward.5} parent=11 // pred_fallthru
        _
      // Predicated region
      $region53: #{vit_forward.5} parent=11 // pred_check
        %p368 = pneg %p276
      $region54: #{vit_forward.5} parent=11 // pred_check_branch
        %370 = sbr.rel (%p368) target = $region56
      $region55: #{vit_forward.5} parent=11 // pred_region
        _
      $region56: #{vit_forward.5} parent=11 // pred_fallthru
        _
      // Predicated region
      $region57: #{vit_forward.5} parent=11 // pred_check
        %p371 = pneg %p297
      $region58: #{vit_forward.5} parent=11 // pred_check_branch
        %373 = sbr.rel (%p371) target = $region60
      $region59: #{vit_forward.5} parent=11 // pred_region
        _
      $region60: #{vit_forward.5} parent=11 // pred_fallthru
        _
    $region12: #{vit_forward.5} parent=5 // pred_fallthru
      _
    %p374 = scmp.lt.s32.totalorder %s19, 2
    // Predicated region
    $region61: #{vit_forward.5} parent=5 // pred_check
      %p375 = pneg %p374
    $region62: #{vit_forward.5} parent=5 // pred_check_branch
      %377 = sbr.rel (%p375) target = $region64
    $region63: #{vit_forward.5} parent=5 // pred_region
      // Predicated region
      $region65: #{vit_forward.5} parent=63 // pred_check
        %p378 = pneg %p39
      $region66: #{vit_forward.5} parent=63 // pred_check_branch
        %380 = sbr.rel (%p378) target = $region68
      $region67: #{vit_forward.5} parent=63 // pred_region
        %p381 = scmp.lt.s32.totalorder %s19, 1
        %s382 = scalar_select %p381, %s19, 1
        %s383 = smul.addr %s382, 3
        %s384 = smul.addr %s383, 8
        %s385 = scalar_lea.vmem %s0, %s384
      $region68: #{vit_forward.5} parent=63 // pred_fallthru
        _
    $region64: #{vit_forward.5} parent=5 // pred_fallthru
      _
    %p386 = scmp.le.s32.totalorder 1, %s19
    %p387 = scmp.lt.s32.totalorder %s19, 3
    %p388 = pnand %p386, %p387
    %p389 = pneg %p388
    // Predicated region
    $region69: #{vit_forward.5} parent=5 // pred_check
      _
    $region70: #{vit_forward.5} parent=5 // pred_check_branch
      %391 = sbr.rel (%p388) target = $region72
    $region71: #{vit_forward.5} parent=5 // pred_region
      %s392 = ssub.s32 %s19, 1
      %p393 = scmp.lt.s32.totalorder %s24, 1
      %s394 = scalar_select %p393, %s24, 1
      %s395 = smul.addr %s394, 3
      %s396 = smul.addr %s395, 8
      %s397 = scalar_lea.vmem %s0, %s396
      %p398 = pneg %p45
      %p399 = pneg %p42
      %p400 = pneg %p66
      %p401 = pneg %p63
      %p402 = pneg %p87
      %p403 = pneg %p84
      %p404 = pneg %p108
      %p405 = pneg %p105
      %p406 = pneg %p129
      %p407 = pneg %p126
      %p408 = pneg %p150
      %p409 = pneg %p147
      %p410 = pneg %p171
      %p411 = pneg %p168
      %p412 = pneg %p192
      %p413 = pneg %p189
      %p414 = pneg %p213
      %p415 = pneg %p210
      %p416 = pneg %p234
      %p417 = pneg %p231
      %p418 = pneg %p255
      %p419 = pneg %p252
      %p420 = pneg %p276
      %p421 = pneg %p273
      %p422 = pneg %p297
      %p423 = pneg %p294
      %p424 = pneg %p323
      %p425 = pneg %p320
      %p426 = scmp.lt.s32.totalorder %s24, 1
      %s427 = scalar_select %p426, %s24, 1
      %s428 = smul.addr %s427, 3
      %s429 = smul.addr %s428, 8
      %s430 = scalar_lea.vmem %s13, %s429
      %p431 = scmp.lt.s32.totalorder %s24, 1
      %s432 = scalar_select %p431, %s24, 1
      %s433 = smul.addr %s432, 3
      %s434 = smul.addr %s433, 8
      %s435 = scalar_lea.vmem %s0, %s434
      %p436 = scmp.lt.s32.totalorder %s24, 1
      %s437 = scalar_select %p436, %s24, 1
      %s438 = smul.addr %s437, 3
      %s439 = smul.addr %s438, 8
      %s440 = scalar_lea.vmem %s13, %s439
      %v441 = vld [vmem:[%s435] sm:$0xff]
      %v442 = vld [vmem:[%s435 + $0x8] sm:$0xff]
      %v443 = vld [vmem:[%s435 + $0x10] sm:$0x1]
      %v444 = vld [vmem:[%s1] sm:$0x1]
      %v445 = vld [vmem:[%s2] sm:$0x1]
      %vm446 = vcmask 392192
      %v447 = vsel %vm446, %v441, 0.0
      %448 = vadd.xlane.f32.xlu0 %v447
      %v449 = vpop.xlane.xlu0 %448
      %v450 = vsel %vm446, %v442, 0.0
      %451 = vadd.xlane.f32.xlu0 %v450
      %v452 = vpop.xlane.xlu0 %451
      %vm453 = vcmask 385024
      %v454 = vsel %vm453, %v443, 0.0
      %455 = vadd.xlane.f32.xlu0 %v454
      %v456 = vpop.xlane.xlu0 %455
      %v457 = vrcp.pop 48.0
      %v458 = vmul.f32 48.0, %v457
      %v459 = vsub.f32 1.0, %v458
      %v460 = vmul.f32 %v457, %v459
      %v461 = vadd.f32 %v457, %v460
      %vm462 = vweird.f32 %v457
      %v463 = vsel %vm462, %v457, %v461
      %v464 = vmul.f32 %v449, %v463
      %v465 = vmul.f32 %v452, %v463
      %v466 = vmul.f32 %v456, %v463
      %v467 = vsub.f32 %v441, %v464
      %v468 = vsub.f32 %v442, %v465
      %v469 = vsub.f32 %v443, %v466
      %v470 = vmul.f32 %v467, %v467
      %v471 = vmul.f32 %v468, %v468
      %v472 = vmul.f32 %v469, %v469
      %v473 = vsel %vm446, %v470, 0.0
      %474 = vadd.xlane.f32.xlu0 %v473
      %v475 = vpop.xlane.xlu0 %474
      %v476 = vsel %vm446, %v471, 0.0
      %477 = vadd.xlane.f32.xlu0 %v476
      %v478 = vpop.xlane.xlu0 %477
      %v479 = vsel %vm453, %v472, 0.0
      %480 = vadd.xlane.f32.xlu0 %v479
      %v481 = vpop.xlane.xlu0 %480
      %v482 = vmul.f32 %v475, %v463
      %v483 = vmul.f32 %v478, %v463
      %v484 = vmul.f32 %v481, %v463
      %v485 = vadd.f32 %v482, 1e-05
      %v486 = vadd.f32 %v483, 1e-05
      %v487 = vadd.f32 %v484, 1e-05
      %v488 = vrsqrt.pop %v485
      %v489 = vmul.f32 %v488, %v485
      %v490 = vmul.f32 %v489, %v488
      %v491 = vmul.f32 0.5, %v490
      %v492 = vsub.f32 1.5, %v491
      %v493 = vmul.f32 %v488, %v492
      %vm494 = vweird.f32 %v485
      %vm495 = vweird.f32 %v488
      %vm496 = vmor %vm494, %vm495
      %v497 = vsel %vm496, %v488, %v493
      %v498 = vrsqrt.pop %v486
      %v499 = vmul.f32 %v498, %v486
      %v500 = vmul.f32 %v499, %v498
      %v501 = vmul.f32 0.5, %v500
      %v502 = vsub.f32 1.5, %v501
      %v503 = vmul.f32 %v498, %v502
      %vm504 = vweird.f32 %v486
      %vm505 = vweird.f32 %v498
      %vm506 = vmor %vm504, %vm505
      %v507 = vsel %vm506, %v498, %v503
      %v508 = vrsqrt.pop %v487
      %v509 = vmul.f32 %v508, %v487
      %v510 = vmul.f32 %v509, %v508
      %v511 = vmul.f32 0.5, %v510
      %v512 = vsub.f32 1.5, %v511
      %v513 = vmul.f32 %v508, %v512
      %vm514 = vweird.f32 %v487
      %vm515 = vweird.f32 %v508
      %vm516 = vmor %vm514, %vm515
      %v517 = vsel %vm516, %v508, %v513
      %v518 = vmul.f32 %v467, %v497
      %v519 = vmul.f32 %v468, %v507
      %v520 = vmul.f32 %v469, %v517
      %v522 = vperm.slane %v444, 0
      %v524 = vmul.f32 %v518, %v522
      %v525 = vmul.f32 %v519, %v522
      %v526 = vmul.f32 %v520, %v522
      %v528 = vperm.slane %v445, 0
      %v530 = vadd.f32 %v524, %v528
      %v531 = vadd.f32 %v525, %v528
      %v532 = vadd.f32 %v526, %v528
      %v533 = vld [vmem:[%s3] sm:$0xff]
      %v534 = vld [vmem:[%s3 + $0x8] sm:$0xff]
      %v535 = vld [vmem:[%s3 + $0x10] sm:$0xff]
      %v536 = vld [vmem:[%s3 + $0x18] sm:$0xff]
      %v537 = vld [vmem:[%s3 + $0x20] sm:$0xff]
      %v538 = vld [vmem:[%s3 + $0x28] sm:$0xff]
      %v539 = vld [vmem:[%s3 + $0x30] sm:$0xff]
      %v540 = vld [vmem:[%s3 + $0x38] sm:$0xff]
      %v541 = vld [vmem:[%s3 + $0x40] sm:$0xff]
      %v542 = vld [vmem:[%s3 + $0x48] sm:$0xff]
      %v543 = vld [vmem:[%s3 + $0x50] sm:$0xff]
      %v544 = vld [vmem:[%s3 + $0x58] sm:$0xff]
      %v545 = vld [vmem:[%s4] sm:$0x3]
      %v547 = vperm.slane %v545, 0
      %v548 = vperm.slane %v545, 1
      %v552 = vsel %vm446, %v530, 0
      %v555 = vsel %vm446, %v531, 0
      %v558 = vsel %vm446, %v532, 0
      %560 = vmatpush.msra.mxu0 0.0
      %561 = vmatpush.msra.mxu0 0.0
      %562 = vmatpush.msra.mxu0 0.0
      %563 = vmatpush.msra.mxu0 0.0
      %564 = vmatpush.msra.mxu0 0.0
      %565 = vmatpush.msra.mxu0 0.0
      %566 = vmatpush.msra.mxu0 0.0
      %567 = vmatpush.msra.mxu0 0.0
      %568 = vmatpush.msra.mxu0 0.0
      %569 = vmatpush.msra.mxu0 0.0
      %570 = vmatpush.msra.mxu0 %v543
      %571 = vmatpush.msra.mxu0 %v541
      %572 = vmatpush.msra.mxu0 %v539
      %573 = vmatpush.msra.mxu0 %v537
      %574 = vmatpush.msra.mxu0 %v535
      %575 = vmatpush.msra.mxu0 %v533
      %576 = vmatmul.f32.gmra.mxu0 %v552
      %v577 = vpop.f32.mrf.mxu0
      %v578 = vadd.f32 %v547, %v577
      %579 = vmatmul.f32.gmra.mxu0 %v555
      %v580 = vpop.f32.mrf.mxu0
      %v581 = vadd.f32 %v547, %v580
      %582 = vmatmul.f32.gmra.mxu0 %v558
      %v583 = vpop.f32.mrf.mxu0
      %v584 = vadd.f32 %v547, %v583
      %585 = vdwg.mxu0
      %586 = vmatpush.msra.mxu0 0.0
      %587 = vmatpush.msra.mxu0 0.0
      %588 = vmatpush.msra.mxu0 0.0
      %589 = vmatpush.msra.mxu0 0.0
      %590 = vmatpush.msra.mxu0 0.0
      %591 = vmatpush.msra.mxu0 0.0
      %592 = vmatpush.msra.mxu0 0.0
      %593 = vmatpush.msra.mxu0 0.0
      %594 = vmatpush.msra.mxu0 0.0
      %595 = vmatpush.msra.mxu0 0.0
      %596 = vmatpush.msra.mxu0 %v544
      %597 = vmatpush.msra.mxu0 %v542
      %598 = vmatpush.msra.mxu0 %v540
      %599 = vmatpush.msra.mxu0 %v538
      %600 = vmatpush.msra.mxu0 %v536
      %601 = vmatpush.msra.mxu0 %v534
      %602 = vmatmul.f32.gmra.mxu0 %v552
      %v603 = vpop.f32.mrf.mxu0
      %v604 = vadd.f32 %v548, %v603
      %605 = vmatmul.f32.gmra.mxu0 %v555
      %v606 = vpop.f32.mrf.mxu0
      %v607 = vadd.f32 %v548, %v606
      %608 = vmatmul.f32.gmra.mxu0 %v558
      %v609 = vpop.f32.mrf.mxu0
      %v610 = vadd.f32 %v548, %v609
      %611 = vdwg.mxu0
      %v612 = vld [vmem:[%s5] sm:$0xff]
      %v613 = vld [vmem:[%s5 + $0x8] sm:$0xff]
      %v614 = vld [vmem:[%s5 + $0x10] sm:$0xff]
      %v615 = vld [vmem:[%s5 + $0x18] sm:$0xff]
      %v616 = vld [vmem:[%s5 + $0x20] sm:$0xff]
      %v617 = vld [vmem:[%s5 + $0x28] sm:$0xff]
      %v618 = vld [vmem:[%s6] sm:$0x1]
      %v620 = vperm.slane %v618, 0
      %v622 = vmul.f32 %v578, 0.28867513
      %v623 = vmul.f32 %v581, 0.28867513
      %v624 = vmul.f32 %v584, 0.28867513
      %628 = vrot.lane.b32.xlu0 %v578, 80
      %v629 = vpop.permute.xlu0 %628
      %630 = vrot.lane.b32.xlu0 %v581, 80
      %v631 = vpop.permute.xlu0 %630
      %632 = vrot.lane.b32.xlu0 %v584, 80
      %v633 = vpop.permute.xlu0 %632
      %vm634 = vcmask 97280
      %v636 = vsel %vm634, %v622, 0
      %v639 = vsel %vm634, %v623, 0
      %v642 = vsel %vm634, %v624, 0
      %v644 = vsel %vm634, %v629, 0
      %v646 = vsel %vm634, %v631, 0
      %v648 = vsel %vm634, %v633, 0
      %650 = vmatpush.xpose.msra.mxu0 0.0
      %651 = vmatpush.xpose.msra.mxu0 0.0
      %652 = vmatpush.xpose.msra.mxu0 0.0
      %653 = vmatpush.xpose.msra.mxu0 0.0
      %654 = vmatpush.xpose.msra.mxu0 0.0
      %655 = vmatpush.xpose.msra.mxu0 0.0
      %656 = vmatpush.xpose.msra.mxu0 0.0
      %657 = vmatpush.xpose.msra.mxu0 0.0
      %658 = vmatpush.xpose.msra.mxu0 0.0
      %659 = vmatpush.xpose.msra.mxu0 0.0
      %660 = vmatpush.xpose.msra.mxu0 0.0
      %661 = vmatpush.xpose.msra.mxu0 0.0
      %662 = vmatpush.xpose.msra.mxu0 0.0
      %663 = vmatpush.xpose.msra.mxu0 %v648
      %664 = vmatpush.xpose.msra.mxu0 %v646
      %665 = vmatpush.xpose.msra.mxu0 %v644
      %666 = vmatmul.f32.gmra.mxu0 %v636
      %v667 = vpop.f32.mrf.mxu0
      %v668 = vadd.f32 0.0, %v667
      %669 = vmatmul.f32.gmra.mxu0 %v639
      %v670 = vpop.f32.mrf.mxu0
      %v671 = vadd.f32 0.0, %v670
      %672 = vmatmul.f32.gmra.mxu0 %v642
      %v673 = vpop.f32.mrf.mxu0
      %v674 = vadd.f32 0.0, %v673
      %675 = vdwg.mxu0
      %vm676 = vcmask 138240
      %v677 = vsel %vm676, %v668, -inf
      %678 = vmax.xlane.f32.xlu0 %v677
      %v679 = vpop.xlane.xlu0 %678
      %v680 = vsel %vm676, %v671, -inf
      %681 = vmax.xlane.f32.xlu0 %v680
      %v682 = vpop.xlane.xlu0 %681
      %vm683 = vcmask 131072
      %v684 = vsel %vm683, %v674, -inf
      %685 = vmax.xlane.f32.xlu0 %v684
      %v686 = vpop.xlane.xlu0 %685
      %v687 = vsub.f32 %v668, %v679
      %v688 = vsub.f32 %v671, %v682
      %v689 = vsub.f32 %v674, %v686
      %v690 = vmul.f32 %v687, 1.442695
      %v691 = vpow.pop %v690
      %v692 = vmul.f32 %v688, 1.442695
      %v693 = vpow.pop %v692
      %v694 = vmul.f32 %v689, 1.442695
      %v695 = vpow.pop %v694
      %v696 = vsel %vm676, %v691, 0.0
      %697 = vadd.xlane.f32.xlu0 %v696
      %v698 = vpop.xlane.xlu0 %697
      %v699 = vsel %vm676, %v693, 0.0
      %700 = vadd.xlane.f32.xlu0 %v699
      %v701 = vpop.xlane.xlu0 %700
      %v702 = vsel %vm683, %v695, 0.0
      %703 = vadd.xlane.f32.xlu0 %v702
      %v704 = vpop.xlane.xlu0 %703
      %v705 = vrcp.pop %v698
      %v706 = vrcp.pop %v701
      %v707 = vrcp.pop %v704
      %708 = vrot.lane.b32.xlu0 %v578, 32
      %v709 = vpop.permute.xlu0 %708
      %710 = vrot.lane.b32.xlu0 %v581, 32
      %v711 = vpop.permute.xlu0 %710
      %712 = vrot.lane.b32.xlu0 %v584, 32
      %v713 = vpop.permute.xlu0 %712
      %v717 = vsel %vm676, %v691, 0
      %v720 = vsel %vm676, %v693, 0
      %v723 = vsel %vm676, %v695, 0
      %vm725 = vcmask 1040384
      %v726 = vsel %vm725, %v713, 0
      %728 = vmatpush.msra.mxu0 0.0
      %729 = vmatpush.msra.mxu0 0.0
      %730 = vmatpush.msra.mxu0 0.0
      %731 = vmatpush.msra.mxu0 0.0
      %732 = vmatpush.msra.mxu0 0.0
      %733 = vmatpush.msra.mxu0 0.0
      %734 = vmatpush.msra.mxu0 0.0
      %735 = vmatpush.msra.mxu0 0.0
      %736 = vmatpush.msra.mxu0 0.0
      %737 = vmatpush.msra.mxu0 0.0
      %738 = vmatpush.msra.mxu0 0.0
      %739 = vmatpush.msra.mxu0 0.0
      %740 = vmatpush.msra.mxu0 0.0
      %741 = vmatpush.msra.mxu0 %v726
      %742 = vmatpush.msra.mxu0 %v711
      %743 = vmatpush.msra.mxu0 %v709
      %744 = vmatmul.f32.gmra.mxu0 %v717
      %v745 = vpop.f32.mrf.mxu0
      %v746 = vadd.f32 0.0, %v745
      %747 = vmatmul.f32.gmra.mxu0 %v720
      %v748 = vpop.f32.mrf.mxu0
      %v749 = vadd.f32 0.0, %v748
      %750 = vmatmul.f32.gmra.mxu0 %v723
      %v751 = vpop.f32.mrf.mxu0
      %v752 = vadd.f32 0.0, %v751
      %753 = vdwg.mxu0
      %v754 = vmul.f32 %v746, %v705
      %v755 = vmul.f32 %v749, %v706
      %v756 = vmul.f32 %v752, %v707
      %v758 = vsel %vm634, %v754, 0
      %v761 = vsel %vm634, %v755, 0
      %v764 = vsel %vm634, %v756, 0
      %vm766 = vcmask 1043456
      %v768 = vsel %vm766, %v613, 0
      %770 = vmatpush.msra.mxu0 0.0
      %771 = vmatpush.msra.mxu0 0.0
      %772 = vmatpush.msra.mxu0 0.0
      %773 = vmatpush.msra.mxu0 0.0
      %774 = vmatpush.msra.mxu0 0.0
      %775 = vmatpush.msra.mxu0 0.0
      %776 = vmatpush.msra.mxu0 0.0
      %777 = vmatpush.msra.mxu0 0.0
      %778 = vmatpush.msra.mxu0 0.0
      %779 = vmatpush.msra.mxu0 0.0
      %780 = vmatpush.msra.mxu0 0.0
      %781 = vmatpush.msra.mxu0 0.0
      %782 = vmatpush.msra.mxu0 0.0
      %783 = vmatpush.msra.mxu0 0.0
      %784 = vmatpush.msra.mxu0 %v768
      %785 = vmatpush.msra.mxu0 %v612
      %786 = vmatmul.f32.gmra.mxu0 %v758
      %v787 = vpop.f32.mrf.mxu0
      %v788 = vadd.f32 0.0, %v787
      %789 = vmatmul.f32.gmra.mxu0 %v761
      %v790 = vpop.f32.mrf.mxu0
      %v791 = vadd.f32 0.0, %v790
      %792 = vmatmul.f32.gmra.mxu0 %v764
      %v793 = vpop.f32.mrf.mxu0
      %v794 = vadd.f32 0.0, %v793
      %795 = vdwg.mxu0
      %v796 = vadd.f32 %v620, %v788
      %v797 = vadd.f32 %v620, %v791
      %v798 = vadd.f32 %v620, %v794
      %799 = vrot.lane.b32.xlu0 %v622, 116
      %v800 = vpop.permute.xlu0 %799
      %801 = vrot.lane.b32.xlu0 %v623, 116
      %v802 = vpop.permute.xlu0 %801
      %803 = vrot.lane.b32.xlu0 %v624, 116
      %v804 = vpop.permute.xlu0 %803
      %805 = vrot.lane.b32.xlu0 %v578, 68
      %v806 = vpop.permute.xlu0 %805
      %807 = vrot.lane.b32.xlu0 %v581, 68
      %v808 = vpop.permute.xlu0 %807
      %809 = vrot.lane.b32.xlu0 %v584, 68
      %v810 = vpop.permute.xlu0 %809
      %v811 = vsel %vm634, %v800, 0
      %v813 = vsel %vm634, %v802, 0
      %v815 = vsel %vm634, %v804, 0
      %v817 = vsel %vm634, %v806, 0
      %v819 = vsel %vm634, %v808, 0
      %v821 = vsel %vm634, %v810, 0
      %823 = vmatpush.xpose.msra.mxu0 0.0
      %824 = vmatpush.xpose.msra.mxu0 0.0
      %825 = vmatpush.xpose.msra.mxu0 0.0
      %826 = vmatpush.xpose.msra.mxu0 0.0
      %827 = vmatpush.xpose.msra.mxu0 0.0
      %828 = vmatpush.xpose.msra.mxu0 0.0
      %829 = vmatpush.xpose.msra.mxu0 0.0
      %830 = vmatpush.xpose.msra.mxu0 0.0
      %831 = vmatpush.xpose.msra.mxu0 0.0
      %832 = vmatpush.xpose.msra.mxu0 0.0
      %833 = vmatpush.xpose.msra.mxu0 0.0
      %834 = vmatpush.xpose.msra.mxu0 0.0
      %835 = vmatpush.xpose.msra.mxu0 0.0
      %836 = vmatpush.xpose.msra.mxu0 %v821
      %837 = vmatpush.xpose.msra.mxu0 %v819
      %838 = vmatpush.xpose.msra.mxu0 %v817
      %839 = vmatmul.f32.gmra.mxu0 %v811
      %v840 = vpop.f32.mrf.mxu0
      %v841 = vadd.f32 0.0, %v840
      %842 = vmatmul.f32.gmra.mxu0 %v813
      %v843 = vpop.f32.mrf.mxu0
      %v844 = vadd.f32 0.0, %v843
      %845 = vmatmul.f32.gmra.mxu0 %v815
      %v846 = vpop.f32.mrf.mxu0
      %v847 = vadd.f32 0.0, %v846
      %848 = vdwg.mxu0
      %v849 = vsel %vm676, %v841, -inf
      %850 = vmax.xlane.f32.xlu0 %v849
      %v851 = vpop.xlane.xlu0 %850
      %v852 = vsel %vm676, %v844, -inf
      %853 = vmax.xlane.f32.xlu0 %v852
      %v854 = vpop.xlane.xlu0 %853
      %v855 = vsel %vm683, %v847, -inf
      %856 = vmax.xlane.f32.xlu0 %v855
      %v857 = vpop.xlane.xlu0 %856
      %v858 = vsub.f32 %v841, %v851
      %v859 = vsub.f32 %v844, %v854
      %v860 = vsub.f32 %v847, %v857
      %v861 = vmul.f32 %v858, 1.442695
      %v862 = vpow.pop %v861
      %v863 = vmul.f32 %v859, 1.442695
      %v864 = vpow.pop %v863
      %v865 = vmul.f32 %v860, 1.442695
      %v866 = vpow.pop %v865
      %v867 = vsel %vm676, %v862, 0.0
      %868 = vadd.xlane.f32.xlu0 %v867
      %v869 = vpop.xlane.xlu0 %868
      %v870 = vsel %vm676, %v864, 0.0
      %871 = vadd.xlane.f32.xlu0 %v870
      %v872 = vpop.xlane.xlu0 %871
      %v873 = vsel %vm683, %v866, 0.0
      %874 = vadd.xlane.f32.xlu0 %v873
      %v875 = vpop.xlane.xlu0 %874
      %v876 = vrcp.pop %v869
      %v877 = vrcp.pop %v872
      %v878 = vrcp.pop %v875
      %879 = vrot.lane.b32.xlu0 %v578, 20
      %v880 = vpop.permute.xlu0 %879
      %881 = vrot.lane.b32.xlu0 %v581, 20
      %v882 = vpop.permute.xlu0 %881
      %883 = vrot.lane.b32.xlu0 %v584, 20
      %v884 = vpop.permute.xlu0 %883
      %v888 = vsel %vm676, %v862, 0
      %v891 = vsel %vm676, %v864, 0
      %v894 = vsel %vm676, %v866, 0
      %v896 = vsel %vm725, %v884, 0
      %898 = vmatpush.msra.mxu0 0.0
      %899 = vmatpush.msra.mxu0 0.0
      %900 = vmatpush.msra.mxu0 0.0
      %901 = vmatpush.msra.mxu0 0.0
      %902 = vmatpush.msra.mxu0 0.0
      %903 = vmatpush.msra.mxu0 0.0
      %904 = vmatpush.msra.mxu0 0.0
      %905 = vmatpush.msra.mxu0 0.0
      %906 = vmatpush.msra.mxu0 0.0
      %907 = vmatpush.msra.mxu0 0.0
      %908 = vmatpush.msra.mxu0 0.0
      %909 = vmatpush.msra.mxu0 0.0
      %910 = vmatpush.msra.mxu0 0.0
      %911 = vmatpush.msra.mxu0 %v896
      %912 = vmatpush.msra.mxu0 %v882
      %913 = vmatpush.msra.mxu0 %v880
      %914 = vmatmul.f32.gmra.mxu0 %v888
      %v915 = vpop.f32.mrf.mxu0
      %v916 = vadd.f32 0.0, %v915
      %917 = vmatmul.f32.gmra.mxu0 %v891
      %v918 = vpop.f32.mrf.mxu0
      %v919 = vadd.f32 0.0, %v918
      %920 = vmatmul.f32.gmra.mxu0 %v894
      %v921 = vpop.f32.mrf.mxu0
      %v922 = vadd.f32 0.0, %v921
      %923 = vdwg.mxu0
      %v924 = vmul.f32 %v916, %v876
      %v925 = vmul.f32 %v919, %v877
      %v926 = vmul.f32 %v922, %v878
      %v928 = vrot.slane %v613, 4
      %v929 = vrot.slane %v614, 4
      %v930 = vsel %vm766, %v928, %v929
      %v933 = vsel %vm634, %v924, 0
      %v936 = vsel %vm634, %v925, 0
      %v939 = vsel %vm634, %v926, 0
      %v941 = vsel %vm766, %v929, 0
      %943 = vmatpush.msra.mxu0 0.0
      %944 = vmatpush.msra.mxu0 0.0
      %945 = vmatpush.msra.mxu0 0.0
      %946 = vmatpush.msra.mxu0 0.0
      %947 = vmatpush.msra.mxu0 0.0
      %948 = vmatpush.msra.mxu0 0.0
      %949 = vmatpush.msra.mxu0 0.0
      %950 = vmatpush.msra.mxu0 0.0
      %951 = vmatpush.msra.mxu0 0.0
      %952 = vmatpush.msra.mxu0 0.0
      %953 = vmatpush.msra.mxu0 0.0
      %954 = vmatpush.msra.mxu0 0.0
      %955 = vmatpush.msra.mxu0 0.0
      %956 = vmatpush.msra.mxu0 0.0
      %957 = vmatpush.msra.mxu0 %v941
      %958 = vmatpush.msra.mxu0 %v930
      %959 = vmatmul.f32.gmra.mxu0 %v933
      %v960 = vpop.f32.mrf.mxu0
      %v961 = vadd.f32 0.0, %v960
      %962 = vmatmul.f32.gmra.mxu0 %v936
      %v963 = vpop.f32.mrf.mxu0
      %v964 = vadd.f32 0.0, %v963
      %965 = vmatmul.f32.gmra.mxu0 %v939
      %v966 = vpop.f32.mrf.mxu0
      %v967 = vadd.f32 0.0, %v966
      %968 = vdwg.mxu0
      %v969 = vadd.f32 %v796, %v961
      %v970 = vadd.f32 %v797, %v964
      %v971 = vadd.f32 %v798, %v967
      %972 = vrot.lane.b32.xlu0 %v622, 104
      %v973 = vpop.permute.xlu0 %972
      %974 = vrot.lane.b32.xlu0 %v623, 104
      %v975 = vpop.permute.xlu0 %974
      %976 = vrot.lane.b32.xlu0 %v624, 104
      %v977 = vpop.permute.xlu0 %976
      %978 = vrot.lane.b32.xlu0 %v578, 56
      %v979 = vpop.permute.xlu0 %978
      %980 = vrot.lane.b32.xlu0 %v581, 56
      %v981 = vpop.permute.xlu0 %980
      %982 = vrot.lane.b32.xlu0 %v584, 56
      %v983 = vpop.permute.xlu0 %982
      %v984 = vsel %vm634, %v973, 0
      %v986 = vsel %vm634, %v975, 0
      %v988 = vsel %vm634, %v977, 0
      %v990 = vsel %vm634, %v979, 0
      %v992 = vsel %vm634, %v981, 0
      %v994 = vsel %vm634, %v983, 0
      %996 = vmatpush.xpose.msra.mxu0 0.0
      %997 = vmatpush.xpose.msra.mxu0 0.0
      %998 = vmatpush.xpose.msra.mxu0 0.0
      %999 = vmatpush.xpose.msra.mxu0 0.0
      %1000 = vmatpush.xpose.msra.mxu0 0.0
      %1001 = vmatpush.xpose.msra.mxu0 0.0
      %1002 = vmatpush.xpose.msra.mxu0 0.0
      %1003 = vmatpush.xpose.msra.mxu0 0.0
      %1004 = vmatpush.xpose.msra.mxu0 0.0
      %1005 = vmatpush.xpose.msra.mxu0 0.0
      %1006 = vmatpush.xpose.msra.mxu0 0.0
      %1007 = vmatpush.xpose.msra.mxu0 0.0
      %1008 = vmatpush.xpose.msra.mxu0 0.0
      %1009 = vmatpush.xpose.msra.mxu0 %v994
      %1010 = vmatpush.xpose.msra.mxu0 %v992
      %1011 = vmatpush.xpose.msra.mxu0 %v990
      %1012 = vmatmul.f32.gmra.mxu0 %v984
      %v1013 = vpop.f32.mrf.mxu0
      %v1014 = vadd.f32 0.0, %v1013
      %1015 = vmatmul.f32.gmra.mxu0 %v986
      %v1016 = vpop.f32.mrf.mxu0
      %v1017 = vadd.f32 0.0, %v1016
      %1018 = vmatmul.f32.gmra.mxu0 %v988
      %v1019 = vpop.f32.mrf.mxu0
      %v1020 = vadd.f32 0.0, %v1019
      %1021 = vdwg.mxu0
      %v1022 = vsel %vm676, %v1014, -inf
      %1023 = vmax.xlane.f32.xlu0 %v1022
      %v1024 = vpop.xlane.xlu0 %1023
      %v1025 = vsel %vm676, %v1017, -inf
      %1026 = vmax.xlane.f32.xlu0 %v1025
      %v1027 = vpop.xlane.xlu0 %1026
      %v1028 = vsel %vm683, %v1020, -inf
      %1029 = vmax.xlane.f32.xlu0 %v1028
      %v1030 = vpop.xlane.xlu0 %1029
      %v1031 = vsub.f32 %v1014, %v1024
      %v1032 = vsub.f32 %v1017, %v1027
      %v1033 = vsub.f32 %v1020, %v1030
      %v1034 = vmul.f32 %v1031, 1.442695
      %v1035 = vpow.pop %v1034
      %v1036 = vmul.f32 %v1032, 1.442695
      %v1037 = vpow.pop %v1036
      %v1038 = vmul.f32 %v1033, 1.442695
      %v1039 = vpow.pop %v1038
      %v1040 = vsel %vm676, %v1035, 0.0
      %1041 = vadd.xlane.f32.xlu0 %v1040
      %v1042 = vpop.xlane.xlu0 %1041
      %v1043 = vsel %vm676, %v1037, 0.0
      %1044 = vadd.xlane.f32.xlu0 %v1043
      %v1045 = vpop.xlane.xlu0 %1044
      %v1046 = vsel %vm683, %v1039, 0.0
      %1047 = vadd.xlane.f32.xlu0 %v1046
      %v1048 = vpop.xlane.xlu0 %1047
      %v1049 = vrcp.pop %v1042
      %v1050 = vrcp.pop %v1045
      %v1051 = vrcp.pop %v1048
      %1055 = vrot.lane.b32.xlu0 %v578, 8
      %v1056 = vpop.permute.xlu0 %1055
      %1057 = vrot.lane.b32.xlu0 %v604, 8
      %v1058 = vpop.permute.xlu0 %1057
      %1059 = vrot.lane.b32.xlu0 %v581, 8
      %v1060 = vpop.permute.xlu0 %1059
      %1061 = vrot.lane.b32.xlu0 %v607, 8
      %v1062 = vpop.permute.xlu0 %1061
      %1063 = vrot.lane.b32.xlu0 %v584, 8
      %v1064 = vpop.permute.xlu0 %1063
      %1065 = vrot.lane.b32.xlu0 %v610, 8
      %v1066 = vpop.permute.xlu0 %1065
      %vm1067 = vcmask 64512
      %v1068 = vsel %vm1067, %v1056, %v1058
      %v1069 = vsel %vm1067, %v1060, %v1062
      %v1070 = vsel %vm1067, %v1064, %v1066
      %v1074 = vsel %vm676, %v1035, 0
      %v1077 = vsel %vm676, %v1037, 0
      %v1080 = vsel %vm676, %v1039, 0
      %v1082 = vsel %vm725, %v1070, 0
      %1084 = vmatpush.msra.mxu0 0.0
      %1085 = vmatpush.msra.mxu0 0.0
      %1086 = vmatpush.msra.mxu0 0.0
      %1087 = vmatpush.msra.mxu0 0.0
      %1088 = vmatpush.msra.mxu0 0.0
      %1089 = vmatpush.msra.mxu0 0.0
      %1090 = vmatpush.msra.mxu0 0.0
      %1091 = vmatpush.msra.mxu0 0.0
      %1092 = vmatpush.msra.mxu0 0.0
      %1093 = vmatpush.msra.mxu0 0.0
      %1094 = vmatpush.msra.mxu0 0.0
      %1095 = vmatpush.msra.mxu0 0.0
      %1096 = vmatpush.msra.mxu0 0.0
      %1097 = vmatpush.msra.mxu0 %v1082
      %1098 = vmatpush.msra.mxu0 %v1069
      %1099 = vmatpush.msra.mxu0 %v1068
      %1100 = vmatmul.f32.gmra.mxu0 %v1074
      %v1101 = vpop.f32.mrf.mxu0
      %v1102 = vadd.f32 0.0, %v1101
      %1103 = vmatmul.f32.gmra.mxu0 %v1077
      %v1104 = vpop.f32.mrf.mxu0
      %v1105 = vadd.f32 0.0, %v1104
      %1106 = vmatmul.f32.gmra.mxu0 %v1080
      %v1107 = vpop.f32.mrf.mxu0
      %v1108 = vadd.f32 0.0, %v1107
      %1109 = vdwg.mxu0
      %v1110 = vmul.f32 %v1102, %v1049
      %v1111 = vmul.f32 %v1105, %v1050
      %v1112 = vmul.f32 %v1108, %v1051
      %v1114 = vsel %vm634, %v1110, 0
      %v1117 = vsel %vm634, %v1111, 0
      %v1120 = vsel %vm634, %v1112, 0
      %v1123 = vsel %vm766, %v616, 0
      %1125 = vmatpush.msra.mxu0 0.0
      %1126 = vmatpush.msra.mxu0 0.0
      %1127 = vmatpush.msra.mxu0 0.0
      %1128 = vmatpush.msra.mxu0 0.0
      %1129 = vmatpush.msra.mxu0 0.0
      %1130 = vmatpush.msra.mxu0 0.0
      %1131 = vmatpush.msra.mxu0 0.0
      %1132 = vmatpush.msra.mxu0 0.0
      %1133 = vmatpush.msra.mxu0 0.0
      %1134 = vmatpush.msra.mxu0 0.0
      %1135 = vmatpush.msra.mxu0 0.0
      %1136 = vmatpush.msra.mxu0 0.0
      %1137 = vmatpush.msra.mxu0 0.0
      %1138 = vmatpush.msra.mxu0 0.0
      %1139 = vmatpush.msra.mxu0 %v1123
      %1140 = vmatpush.msra.mxu0 %v615
      %1141 = vmatmul.f32.gmra.mxu0 %v1114
      %v1142 = vpop.f32.mrf.mxu0
      %v1143 = vadd.f32 0.0, %v1142
      %1144 = vmatmul.f32.gmra.mxu0 %v1117
      %v1145 = vpop.f32.mrf.mxu0
      %v1146 = vadd.f32 0.0, %v1145
      %1147 = vmatmul.f32.gmra.mxu0 %v1120
      %v1148 = vpop.f32.mrf.mxu0
      %v1149 = vadd.f32 0.0, %v1148
      %1150 = vdwg.mxu0
      %v1151 = vadd.f32 %v969, %v1143
      %v1152 = vadd.f32 %v970, %v1146
      %v1153 = vadd.f32 %v971, %v1149
      %1154 = vrot.lane.b32.xlu0 %v622, 92
      %v1155 = vpop.permute.xlu0 %1154
      %1156 = vrot.lane.b32.xlu0 %v623, 92
      %v1157 = vpop.permute.xlu0 %1156
      %1158 = vrot.lane.b32.xlu0 %v624, 92
      %v1159 = vpop.permute.xlu0 %1158
      %1160 = vrot.lane.b32.xlu0 %v578, 44
      %v1161 = vpop.permute.xlu0 %1160
      %1162 = vrot.lane.b32.xlu0 %v581, 44
      %v1163 = vpop.permute.xlu0 %1162
      %1164 = vrot.lane.b32.xlu0 %v584, 44
      %v1165 = vpop.permute.xlu0 %1164
      %v1166 = vsel %vm634, %v1155, 0
      %v1168 = vsel %vm634, %v1157, 0
      %v1170 = vsel %vm634, %v1159, 0
      %v1172 = vsel %vm634, %v1161, 0
      %v1174 = vsel %vm634, %v1163, 0
      %v1176 = vsel %vm634, %v1165, 0
      %1178 = vmatpush.xpose.msra.mxu0 0.0
      %1179 = vmatpush.xpose.msra.mxu0 0.0
      %1180 = vmatpush.xpose.msra.mxu0 0.0
      %1181 = vmatpush.xpose.msra.mxu0 0.0
      %1182 = vmatpush.xpose.msra.mxu0 0.0
      %1183 = vmatpush.xpose.msra.mxu0 0.0
      %1184 = vmatpush.xpose.msra.mxu0 0.0
      %1185 = vmatpush.xpose.msra.mxu0 0.0
      %1186 = vmatpush.xpose.msra.mxu0 0.0
      %1187 = vmatpush.xpose.msra.mxu0 0.0
      %1188 = vmatpush.xpose.msra.mxu0 0.0
      %1189 = vmatpush.xpose.msra.mxu0 0.0
      %1190 = vmatpush.xpose.msra.mxu0 0.0
      %1191 = vmatpush.xpose.msra.mxu0 %v1176
      %1192 = vmatpush.xpose.msra.mxu0 %v1174
      %1193 = vmatpush.xpose.msra.mxu0 %v1172
      %1194 = vmatmul.f32.gmra.mxu0 %v1166
      %v1195 = vpop.f32.mrf.mxu0
      %v1196 = vadd.f32 0.0, %v1195
      %1197 = vmatmul.f32.gmra.mxu0 %v1168
      %v1198 = vpop.f32.mrf.mxu0
      %v1199 = vadd.f32 0.0, %v1198
      %1200 = vmatmul.f32.gmra.mxu0 %v1170
      %v1201 = vpop.f32.mrf.mxu0
      %v1202 = vadd.f32 0.0, %v1201
      %1203 = vdwg.mxu0
      %v1204 = vsel %vm676, %v1196, -inf
      %1205 = vmax.xlane.f32.xlu0 %v1204
      %v1206 = vpop.xlane.xlu0 %1205
      %v1207 = vsel %vm676, %v1199, -inf
      %1208 = vmax.xlane.f32.xlu0 %v1207
      %v1209 = vpop.xlane.xlu0 %1208
      %v1210 = vsel %vm683, %v1202, -inf
      %1211 = vmax.xlane.f32.xlu0 %v1210
      %v1212 = vpop.xlane.xlu0 %1211
      %v1213 = vsub.f32 %v1196, %v1206
      %v1214 = vsub.f32 %v1199, %v1209
      %v1215 = vsub.f32 %v1202, %v1212
      %v1216 = vmul.f32 %v1213, 1.442695
      %v1217 = vpow.pop %v1216
      %v1218 = vmul.f32 %v1214, 1.442695
      %v1219 = vpow.pop %v1218
      %v1220 = vmul.f32 %v1215, 1.442695
      %v1221 = vpow.pop %v1220
      %v1222 = vsel %vm676, %v1217, 0.0
      %1223 = vadd.xlane.f32.xlu0 %v1222
      %v1224 = vpop.xlane.xlu0 %1223
      %v1225 = vsel %vm676, %v1219, 0.0
      %1226 = vadd.xlane.f32.xlu0 %v1225
      %v1227 = vpop.xlane.xlu0 %1226
      %v1228 = vsel %vm683, %v1221, 0.0
      %1229 = vadd.xlane.f32.xlu0 %v1228
      %v1230 = vpop.xlane.xlu0 %1229
      %v1231 = vrcp.pop %v1224
      %v1232 = vrcp.pop %v1227
      %v1233 = vrcp.pop %v1230
      %1234 = vrot.lane.b32.xlu0 %v604, 124
      %v1235 = vpop.permute.xlu0 %1234
      %1236 = vrot.lane.b32.xlu0 %v607, 124
      %v1237 = vpop.permute.xlu0 %1236
      %1238 = vrot.lane.b32.xlu0 %v610, 124
      %v1239 = vpop.permute.xlu0 %1238
      %v1243 = vsel %vm676, %v1217, 0
      %v1246 = vsel %vm676, %v1219, 0
      %v1249 = vsel %vm676, %v1221, 0
      %v1251 = vsel %vm725, %v1239, 0
      %1253 = vmatpush.msra.mxu0 0.0
      %1254 = vmatpush.msra.mxu0 0.0
      %1255 = vmatpush.msra.mxu0 0.0
      %1256 = vmatpush.msra.mxu0 0.0
      %1257 = vmatpush.msra.mxu0 0.0
      %1258 = vmatpush.msra.mxu0 0.0
      %1259 = vmatpush.msra.mxu0 0.0
      %1260 = vmatpush.msra.mxu0 0.0
      %1261 = vmatpush.msra.mxu0 0.0
      %1262 = vmatpush.msra.mxu0 0.0
      %1263 = vmatpush.msra.mxu0 0.0
      %1264 = vmatpush.msra.mxu0 0.0
      %1265 = vmatpush.msra.mxu0 0.0
      %1266 = vmatpush.msra.mxu0 %v1251
      %1267 = vmatpush.msra.mxu0 %v1237
      %1268 = vmatpush.msra.mxu0 %v1235
      %1269 = vmatmul.f32.gmra.mxu0 %v1243
      %v1270 = vpop.f32.mrf.mxu0
      %v1271 = vadd.f32 0.0, %v1270
      %1272 = vmatmul.f32.gmra.mxu0 %v1246
      %v1273 = vpop.f32.mrf.mxu0
      %v1274 = vadd.f32 0.0, %v1273
      %1275 = vmatmul.f32.gmra.mxu0 %v1249
      %v1276 = vpop.f32.mrf.mxu0
      %v1277 = vadd.f32 0.0, %v1276
      %1278 = vdwg.mxu0
      %v1279 = vmul.f32 %v1271, %v1231
      %v1280 = vmul.f32 %v1274, %v1232
      %v1281 = vmul.f32 %v1277, %v1233
      %v1283 = vrot.slane %v616, 4
      %v1284 = vrot.slane %v617, 4
      %v1285 = vsel %vm766, %v1283, %v1284
      %v1288 = vsel %vm634, %v1279, 0
      %v1291 = vsel %vm634, %v1280, 0
      %v1294 = vsel %vm634, %v1281, 0
      %v1296 = vsel %vm766, %v1284, 0
      %1298 = vmatpush.msra.mxu0 0.0
      %1299 = vmatpush.msra.mxu0 0.0
      %1300 = vmatpush.msra.mxu0 0.0
      %1301 = vmatpush.msra.mxu0 0.0
      %1302 = vmatpush.msra.mxu0 0.0
      %1303 = vmatpush.msra.mxu0 0.0
      %1304 = vmatpush.msra.mxu0 0.0
      %1305 = vmatpush.msra.mxu0 0.0
      %1306 = vmatpush.msra.mxu0 0.0
      %1307 = vmatpush.msra.mxu0 0.0
      %1308 = vmatpush.msra.mxu0 0.0
      %1309 = vmatpush.msra.mxu0 0.0
      %1310 = vmatpush.msra.mxu0 0.0
      %1311 = vmatpush.msra.mxu0 0.0
      %1312 = vmatpush.msra.mxu0 %v1296
      %1313 = vmatpush.msra.mxu0 %v1285
      %1314 = vmatmul.f32.gmra.mxu0 %v1288
      %v1315 = vpop.f32.mrf.mxu0
      %v1316 = vadd.f32 0.0, %v1315
      %1317 = vmatmul.f32.gmra.mxu0 %v1291
      %v1318 = vpop.f32.mrf.mxu0
      %v1319 = vadd.f32 0.0, %v1318
      %1320 = vmatmul.f32.gmra.mxu0 %v1294
      %v1321 = vpop.f32.mrf.mxu0
      %v1322 = vadd.f32 0.0, %v1321
      %1323 = vdwg.mxu0
      %v1324 = vadd.f32 %v1151, %v1316
      %v1325 = vadd.f32 %v1152, %v1319
      %v1326 = vadd.f32 %v1153, %v1322
      %v1327 = vadd.f32 %v441, %v1324
      %v1328 = vadd.f32 %v442, %v1325
      %v1329 = vadd.f32 %v443, %v1326
      %v1330 = vld [vmem:[%s7] sm:$0x1]
      %v1331 = vld [vmem:[%s8] sm:$0x1]
      %v1332 = vsel %vm446, %v1327, 0.0
      %1333 = vadd.xlane.f32.xlu0 %v1332
      %v1334 = vpop.xlane.xlu0 %1333
      %v1335 = vsel %vm446, %v1328, 0.0
      %1336 = vadd.xlane.f32.xlu0 %v1335
      %v1337 = vpop.xlane.xlu0 %1336
      %v1338 = vsel %vm453, %v1329, 0.0
      %1339 = vadd.xlane.f32.xlu0 %v1338
      %v1340 = vpop.xlane.xlu0 %1339
      %v1341 = vmul.f32 %v1334, %v463
      %v1342 = vmul.f32 %v1337, %v463
      %v1343 = vmul.f32 %v1340, %v463
      %v1344 = vsub.f32 %v1327, %v1341
      %v1345 = vsub.f32 %v1328, %v1342
      %v1346 = vsub.f32 %v1329, %v1343
      %v1347 = vmul.f32 %v1344, %v1344
      %v1348 = vmul.f32 %v1345, %v1345
      %v1349 = vmul.f32 %v1346, %v1346
      %v1350 = vsel %vm446, %v1347, 0.0
      %1351 = vadd.xlane.f32.xlu0 %v1350
      %v1352 = vpop.xlane.xlu0 %1351
      %v1353 = vsel %vm446, %v1348, 0.0
      %1354 = vadd.xlane.f32.xlu0 %v1353
      %v1355 = vpop.xlane.xlu0 %1354
      %v1356 = vsel %vm453, %v1349, 0.0
      %1357 = vadd.xlane.f32.xlu0 %v1356
      %v1358 = vpop.xlane.xlu0 %1357
      %v1359 = vmul.f32 %v1352, %v463
      %v1360 = vmul.f32 %v1355, %v463
      %v1361 = vmul.f32 %v1358, %v463
      %v1362 = vadd.f32 %v1359, 1e-05
      %v1363 = vadd.f32 %v1360, 1e-05
      %v1364 = vadd.f32 %v1361, 1e-05
      %v1365 = vrsqrt.pop %v1362
      %v1366 = vmul.f32 %v1365, %v1362
      %v1367 = vmul.f32 %v1366, %v1365
      %v1368 = vmul.f32 0.5, %v1367
      %v1369 = vsub.f32 1.5, %v1368
      %v1370 = vmul.f32 %v1365, %v1369
      %vm1371 = vweird.f32 %v1362
      %vm1372 = vweird.f32 %v1365
      %vm1373 = vmor %vm1371, %vm1372
      %v1374 = vsel %vm1373, %v1365, %v1370
      %v1375 = vrsqrt.pop %v1363
      %v1376 = vmul.f32 %v1375, %v1363
      %v1377 = vmul.f32 %v1376, %v1375
      %v1378 = vmul.f32 0.5, %v1377
      %v1379 = vsub.f32 1.5, %v1378
      %v1380 = vmul.f32 %v1375, %v1379
      %vm1381 = vweird.f32 %v1363
      %vm1382 = vweird.f32 %v1375
      %vm1383 = vmor %vm1381, %vm1382
      %v1384 = vsel %vm1383, %v1375, %v1380
      %v1385 = vrsqrt.pop %v1364
      %v1386 = vmul.f32 %v1385, %v1364
      %v1387 = vmul.f32 %v1386, %v1385
      %v1388 = vmul.f32 0.5, %v1387
      %v1389 = vsub.f32 1.5, %v1388
      %v1390 = vmul.f32 %v1385, %v1389
      %vm1391 = vweird.f32 %v1364
      %vm1392 = vweird.f32 %v1385
      %vm1393 = vmor %vm1391, %vm1392
      %v1394 = vsel %vm1393, %v1385, %v1390
      %v1395 = vmul.f32 %v1344, %v1374
      %v1396 = vmul.f32 %v1345, %v1384
      %v1397 = vmul.f32 %v1346, %v1394
      %v1399 = vperm.slane %v1330, 0
      %v1401 = vmul.f32 %v1395, %v1399
      %v1402 = vmul.f32 %v1396, %v1399
      %v1403 = vmul.f32 %v1397, %v1399
      %v1405 = vperm.slane %v1331, 0
      %v1407 = vadd.f32 %v1401, %v1405
      %v1408 = vadd.f32 %v1402, %v1405
      %v1409 = vadd.f32 %v1403, %v1405
      %v1410 = vld [vmem:[%s9] sm:$0xff]
      %v1411 = vld [vmem:[%s9 + $0x8] sm:$0xff]
      %v1412 = vld [vmem:[%s9 + $0x10] sm:$0xff]
      %v1413 = vld [vmem:[%s9 + $0x18] sm:$0xff]
      %v1414 = vld [vmem:[%s9 + $0x20] sm:$0xff]
      %v1415 = vld [vmem:[%s9 + $0x28] sm:$0xff]
      %v1416 = vld [vmem:[%s9 + $0x30] sm:$0xff]
      %v1417 = vld [vmem:[%s9 + $0x38] sm:$0xff]
      %v1418 = vld [vmem:[%s9 + $0x40] sm:$0xff]
      %v1419 = vld [vmem:[%s9 + $0x48] sm:$0xff]
      %v1420 = vld [vmem:[%s9 + $0x50] sm:$0xff]
      %v1421 = vld [vmem:[%s9 + $0x58] sm:$0xff]
      %v1422 = vld [vmem:[%s10] sm:$0x3]
      %v1424 = vperm.slane %v1422, 0
      %v1425 = vperm.slane %v1422, 1
      %v1429 = vsel %vm446, %v1407, 0
      %v1432 = vsel %vm446, %v1408, 0
      %v1435 = vsel %vm446, %v1409, 0
      %1437 = vmatpush.msra.mxu0 0.0
      %1438 = vmatpush.msra.mxu0 0.0
      %1439 = vmatpush.msra.mxu0 0.0
      %1440 = vmatpush.msra.mxu0 0.0
      %1441 = vmatpush.msra.mxu0 0.0
      %1442 = vmatpush.msra.mxu0 0.0
      %1443 = vmatpush.msra.mxu0 0.0
      %1444 = vmatpush.msra.mxu0 0.0
      %1445 = vmatpush.msra.mxu0 0.0
      %1446 = vmatpush.msra.mxu0 0.0
      %1447 = vmatpush.msra.mxu0 %v1420
      %1448 = vmatpush.msra.mxu0 %v1418
      %1449 = vmatpush.msra.mxu0 %v1416
      %1450 = vmatpush.msra.mxu0 %v1414
      %1451 = vmatpush.msra.mxu0 %v1412
      %1452 = vmatpush.msra.mxu0 %v1410
      %1453 = vmatmul.f32.gmra.mxu0 %v1429
      %v1454 = vpop.f32.mrf.mxu0
      %v1455 = vadd.f32 %v1424, %v1454
      %1456 = vmatmul.f32.gmra.mxu0 %v1432
      %v1457 = vpop.f32.mrf.mxu0
      %v1458 = vadd.f32 %v1424, %v1457
      %1459 = vmatmul.f32.gmra.mxu0 %v1435
      %v1460 = vpop.f32.mrf.mxu0
      %v1461 = vadd.f32 %v1424, %v1460
      %1462 = vdwg.mxu0
      %1463 = vmatpush.msra.mxu0 0.0
      %1464 = vmatpush.msra.mxu0 0.0
      %1465 = vmatpush.msra.mxu0 0.0
      %1466 = vmatpush.msra.mxu0 0.0
      %1467 = vmatpush.msra.mxu0 0.0
      %1468 = vmatpush.msra.mxu0 0.0
      %1469 = vmatpush.msra.mxu0 0.0
      %1470 = vmatpush.msra.mxu0 0.0
      %1471 = vmatpush.msra.mxu0 0.0
      %1472 = vmatpush.msra.mxu0 0.0
      %1473 = vmatpush.msra.mxu0 %v1421
      %1474 = vmatpush.msra.mxu0 %v1419
      %1475 = vmatpush.msra.mxu0 %v1417
      %1476 = vmatpush.msra.mxu0 %v1415
      %1477 = vmatpush.msra.mxu0 %v1413
      %1478 = vmatpush.msra.mxu0 %v1411
      %1479 = vmatmul.f32.gmra.mxu0 %v1429
      %v1480 = vpop.f32.mrf.mxu0
      %v1481 = vadd.f32 %v1425, %v1480
      %1482 = vmatmul.f32.gmra.mxu0 %v1432
      %v1483 = vpop.f32.mrf.mxu0
      %v1484 = vadd.f32 %v1425, %v1483
      %1485 = vmatmul.f32.gmra.mxu0 %v1435
      %v1486 = vpop.f32.mrf.mxu0
      %v1487 = vadd.f32 %v1425, %v1486
      %1488 = vdwg.mxu0
      %v1489 = vmul.f32 %v1455, 0.70710677
      %v1490 = vmul.f32 %v1481, 0.70710677
      %v1491 = vmul.f32 %v1458, 0.70710677
      %v1492 = vmul.f32 %v1484, 0.70710677
      %v1493 = vmul.f32 %v1461, 0.70710677
      %v1494 = vmul.f32 %v1487, 0.70710677
      %v1495 = vand.u32 2147483647, %v1489
      %v1496 = vand.u32 2147483647, %v1490
      %v1497 = vand.u32 2147483647, %v1491
      %v1498 = vand.u32 2147483647, %v1492
      %v1499 = vand.u32 2147483647, %v1493
      %v1500 = vand.u32 2147483647, %v1494
      %v1501 = vmul.f32 %v1495, 0.3275911
      %v1502 = vmul.f32 %v1496, 0.3275911
      %v1503 = vmul.f32 %v1497, 0.3275911
      %v1504 = vmul.f32 %v1498, 0.3275911
      %v1505 = vmul.f32 %v1499, 0.3275911
      %v1506 = vmul.f32 %v1500, 0.3275911
      %v1507 = vadd.f32 %v1501, 1.0
      %v1508 = vadd.f32 %v1502, 1.0
      %v1509 = vadd.f32 %v1503, 1.0
      %v1510 = vadd.f32 %v1504, 1.0
      %v1511 = vadd.f32 %v1505, 1.0
      %v1512 = vadd.f32 %v1506, 1.0
      %v1513 = vrcp.pop %v1507
      %v1514 = vmul.f32 %v1507, %v1513
      %v1515 = vsub.f32 1.0, %v1514
      %v1516 = vmul.f32 %v1513, %v1515
      %v1517 = vadd.f32 %v1513, %v1516
      %vm1518 = vweird.f32 %v1507
      %vm1519 = vweird.f32 %v1513
      %vm1520 = vmor %vm1518, %vm1519
      %v1521 = vsel %vm1520, %v1513, %v1517
      %v1522 = vand.u32 2147483647, %v1507
      %vm1523 = vcmp.eq.f32.partialorder %v1522, 8.507059e+37
      %v1524 = vand.u32 %v1507, 2147483648
      %v1525 = vor.u32 1.1754944e-38, %v1524
      %v1526 = vsel %vm1523, %v1525, %v1521
      %v1527 = vmul.f32 1.0, %v1526
      %v1528 = vrcp.pop %v1508
      %v1529 = vmul.f32 %v1508, %v1528
      %v1530 = vsub.f32 1.0, %v1529
      %v1531 = vmul.f32 %v1528, %v1530
      %v1532 = vadd.f32 %v1528, %v1531
      %vm1533 = vweird.f32 %v1508
      %vm1534 = vweird.f32 %v1528
      %vm1535 = vmor %vm1533, %vm1534
      %v1536 = vsel %vm1535, %v1528, %v1532
      %v1537 = vand.u32 2147483647, %v1508
      %vm1538 = vcmp.eq.f32.partialorder %v1537, 8.507059e+37
      %v1539 = vand.u32 %v1508, 2147483648
      %v1540 = vor.u32 1.1754944e-38, %v1539
      %v1541 = vsel %vm1538, %v1540, %v1536
      %v1542 = vmul.f32 1.0, %v1541
      %v1543 = vrcp.pop %v1509
      %v1544 = vmul.f32 %v1509, %v1543
      %v1545 = vsub.f32 1.0, %v1544
      %v1546 = vmul.f32 %v1543, %v1545
      %v1547 = vadd.f32 %v1543, %v1546
      %vm1548 = vweird.f32 %v1509
      %vm1549 = vweird.f32 %v1543
      %vm1550 = vmor %vm1548, %vm1549
      %v1551 = vsel %vm1550, %v1543, %v1547
      %v1552 = vand.u32 2147483647, %v1509
      %vm1553 = vcmp.eq.f32.partialorder %v1552, 8.507059e+37
      %v1554 = vand.u32 %v1509, 2147483648
      %v1555 = vor.u32 1.1754944e-38, %v1554
      %v1556 = vsel %vm1553, %v1555, %v1551
      %v1557 = vmul.f32 1.0, %v1556
      %v1558 = vrcp.pop %v1510
      %v1559 = vmul.f32 %v1510, %v1558
      %v1560 = vsub.f32 1.0, %v1559
      %v1561 = vmul.f32 %v1558, %v1560
      %v1562 = vadd.f32 %v1558, %v1561
      %vm1563 = vweird.f32 %v1510
      %vm1564 = vweird.f32 %v1558
      %vm1565 = vmor %vm1563, %vm1564
      %v1566 = vsel %vm1565, %v1558, %v1562
      %v1567 = vand.u32 2147483647, %v1510
      %vm1568 = vcmp.eq.f32.partialorder %v1567, 8.507059e+37
      %v1569 = vand.u32 %v1510, 2147483648
      %v1570 = vor.u32 1.1754944e-38, %v1569
      %v1571 = vsel %vm1568, %v1570, %v1566
      %v1572 = vmul.f32 1.0, %v1571
      %v1573 = vrcp.pop %v1511
      %v1574 = vmul.f32 %v1511, %v1573
      %v1575 = vsub.f32 1.0, %v1574
      %v1576 = vmul.f32 %v1573, %v1575
      %v1577 = vadd.f32 %v1573, %v1576
      %vm1578 = vweird.f32 %v1511
      %vm1579 = vweird.f32 %v1573
      %vm1580 = vmor %vm1578, %vm1579
      %v1581 = vsel %vm1580, %v1573, %v1577
      %v1582 = vand.u32 2147483647, %v1511
      %vm1583 = vcmp.eq.f32.partialorder %v1582, 8.507059e+37
      %v1584 = vand.u32 %v1511, 2147483648
      %v1585 = vor.u32 1.1754944e-38, %v1584
      %v1586 = vsel %vm1583, %v1585, %v1581
      %v1587 = vmul.f32 1.0, %v1586
      %v1588 = vrcp.pop %v1512
      %v1589 = vmul.f32 %v1512, %v1588
      %v1590 = vsub.f32 1.0, %v1589
      %v1591 = vmul.f32 %v1588, %v1590
      %v1592 = vadd.f32 %v1588, %v1591
      %vm1593 = vweird.f32 %v1512
      %vm1594 = vweird.f32 %v1588
      %vm1595 = vmor %vm1593, %vm1594
      %v1596 = vsel %vm1595, %v1588, %v1592
      %v1597 = vand.u32 2147483647, %v1512
      %vm1598 = vcmp.eq.f32.partialorder %v1597, 8.507059e+37
      %v1599 = vand.u32 %v1512, 2147483648
      %v1600 = vor.u32 1.1754944e-38, %v1599
      %v1601 = vsel %vm1598, %v1600, %v1596
      %v1602 = vmul.f32 1.0, %v1601
      %v1603 = vmul.f32 %v1527, 1.0614054
      %v1604 = vmul.f32 %v1542, 1.0614054
      %v1605 = vmul.f32 %v1557, 1.0614054
      %v1606 = vmul.f32 %v1572, 1.0614054
      %v1607 = vmul.f32 %v1587, 1.0614054
      %v1608 = vmul.f32 %v1602, 1.0614054
      %v1609 = vadd.f32 %v1603, -1.4531521
      %v1610 = vadd.f32 %v1604, -1.4531521
      %v1611 = vadd.f32 %v1605, -1.4531521
      %v1612 = vadd.f32 %v1606, -1.4531521
      %v1613 = vadd.f32 %v1607, -1.4531521
      %v1614 = vadd.f32 %v1608, -1.4531521
      %v1615 = vmul.f32 %v1527, %v1609
      %v1616 = vmul.f32 %v1542, %v1610
      %v1617 = vmul.f32 %v1557, %v1611
      %v1618 = vmul.f32 %v1572, %v1612
      %v1619 = vmul.f32 %v1587, %v1613
      %v1620 = vmul.f32 %v1602, %v1614
      %v1621 = vadd.f32 %v1615, 1.4214138
      %v1622 = vadd.f32 %v1616, 1.4214138
      %v1623 = vadd.f32 %v1617, 1.4214138
      %v1624 = vadd.f32 %v1618, 1.4214138
      %v1625 = vadd.f32 %v1619, 1.4214138
      %v1626 = vadd.f32 %v1620, 1.4214138
      %v1627 = vmul.f32 %v1527, %v1621
      %v1628 = vmul.f32 %v1542, %v1622
      %v1629 = vmul.f32 %v1557, %v1623
      %v1630 = vmul.f32 %v1572, %v1624
      %v1631 = vmul.f32 %v1587, %v1625
      %v1632 = vmul.f32 %v1602, %v1626
      %v1633 = vadd.f32 %v1627, -0.28449672
      %v1634 = vadd.f32 %v1628, -0.28449672
      %v1635 = vadd.f32 %v1629, -0.28449672
      %v1636 = vadd.f32 %v1630, -0.28449672
      %v1637 = vadd.f32 %v1631, -0.28449672
      %v1638 = vadd.f32 %v1632, -0.28449672
      %v1639 = vmul.f32 %v1527, %v1633
      %v1640 = vmul.f32 %v1542, %v1634
      %v1641 = vmul.f32 %v1557, %v1635
      %v1642 = vmul.f32 %v1572, %v1636
      %v1643 = vmul.f32 %v1587, %v1637
      %v1644 = vmul.f32 %v1602, %v1638
      %v1645 = vadd.f32 %v1639, 0.2548296
      %v1646 = vadd.f32 %v1640, 0.2548296
      %v1647 = vadd.f32 %v1641, 0.2548296
      %v1648 = vadd.f32 %v1642, 0.2548296
      %v1649 = vadd.f32 %v1643, 0.2548296
      %v1650 = vadd.f32 %v1644, 0.2548296
      %v1651 = vmul.f32 %v1527, %v1645
      %v1652 = vmul.f32 %v1542, %v1646
      %v1653 = vmul.f32 %v1557, %v1647
      %v1654 = vmul.f32 %v1572, %v1648
      %v1655 = vmul.f32 %v1587, %v1649
      %v1656 = vmul.f32 %v1602, %v1650
      %v1657 = vsub.f32 0.0, %v1495
      %v1658 = vsub.f32 0.0, %v1496
      %v1659 = vsub.f32 0.0, %v1497
      %v1660 = vsub.f32 0.0, %v1498
      %v1661 = vsub.f32 0.0, %v1499
      %v1662 = vsub.f32 0.0, %v1500
      %v1663 = vmul.f32 %v1657, %v1495
      %v1664 = vmul.f32 %v1658, %v1496
      %v1665 = vmul.f32 %v1659, %v1497
      %v1666 = vmul.f32 %v1660, %v1498
      %v1667 = vmul.f32 %v1661, %v1499
      %v1668 = vmul.f32 %v1662, %v1500
      %v1669 = vmul.f32 %v1663, 1.442695
      %v1670 = vpow.pop %v1669
      %v1671 = vmul.f32 %v1664, 1.442695
      %v1672 = vpow.pop %v1671
      %v1673 = vmul.f32 %v1665, 1.442695
      %v1674 = vpow.pop %v1673
      %v1675 = vmul.f32 %v1666, 1.442695
      %v1676 = vpow.pop %v1675
      %v1677 = vmul.f32 %v1667, 1.442695
      %v1678 = vpow.pop %v1677
      %v1679 = vmul.f32 %v1668, 1.442695
      %v1680 = vpow.pop %v1679
      %v1681 = vmul.f32 %v1651, %v1670
      %v1682 = vmul.f32 %v1652, %v1672
      %v1683 = vmul.f32 %v1653, %v1674
      %v1684 = vmul.f32 %v1654, %v1676
      %v1685 = vmul.f32 %v1655, %v1678
      %v1686 = vmul.f32 %v1656, %v1680
      %v1687 = vsub.f32 1.0, %v1681
      %v1688 = vsub.f32 1.0, %v1682
      %v1689 = vsub.f32 1.0, %v1683
      %v1690 = vsub.f32 1.0, %v1684
      %v1691 = vsub.f32 1.0, %v1685
      %v1692 = vsub.f32 1.0, %v1686
      %vm1693 = vcmp.lt.f32.partialorder %v1489, 0.0
      %vm1694 = vcmp.lt.f32.partialorder %v1490, 0.0
      %vm1695 = vcmp.lt.f32.partialorder %v1491, 0.0
      %vm1696 = vcmp.lt.f32.partialorder %v1492, 0.0
      %vm1697 = vcmp.lt.f32.partialorder %v1493, 0.0
      %vm1698 = vcmp.lt.f32.partialorder %v1494, 0.0
      %v1699 = vsub.f32 0.0, %v1687
      %v1700 = vsub.f32 0.0, %v1688
      %v1701 = vsub.f32 0.0, %v1689
      %v1702 = vsub.f32 0.0, %v1690
      %v1703 = vsub.f32 0.0, %v1691
      %v1704 = vsub.f32 0.0, %v1692
      %v1705 = vsel %vm1693, %v1699, %v1687
      %v1706 = vsel %vm1694, %v1700, %v1688
      %v1707 = vsel %vm1695, %v1701, %v1689
      %v1708 = vsel %vm1696, %v1702, %v1690
      %v1709 = vsel %vm1697, %v1703, %v1691
      %v1710 = vsel %vm1698, %v1704, %v1692
      %v1711 = vmul.f32 %v1455, 0.5
      %v1712 = vmul.f32 %v1481, 0.5
      %v1713 = vmul.f32 %v1458, 0.5
      %v1714 = vmul.f32 %v1484, 0.5
      %v1715 = vmul.f32 %v1461, 0.5
      %v1716 = vmul.f32 %v1487, 0.5
      %v1717 = vadd.f32 %v1705, 1.0
      %v1718 = vadd.f32 %v1706, 1.0
      %v1719 = vadd.f32 %v1707, 1.0
      %v1720 = vadd.f32 %v1708, 1.0
      %v1721 = vadd.f32 %v1709, 1.0
      %v1722 = vadd.f32 %v1710, 1.0
      %v1723 = vmul.f32 %v1711, %v1717
      %v1724 = vmul.f32 %v1712, %v1718
      %v1725 = vmul.f32 %v1713, %v1719
      %v1726 = vmul.f32 %v1714, %v1720
      %v1727 = vmul.f32 %v1715, %v1721
      %v1728 = vmul.f32 %v1716, %v1722
      %v1729 = vld [vmem:[%s11] sm:$0xff]
      %v1730 = vld [vmem:[%s11 + $0x8] sm:$0xff]
      %v1731 = vld [vmem:[%s11 + $0x10] sm:$0xff]
      %v1732 = vld [vmem:[%s11 + $0x18] sm:$0xff]
      %v1733 = vld [vmem:[%s11 + $0x20] sm:$0xff]
      %v1734 = vld [vmem:[%s11 + $0x28] sm:$0xff]
      %v1735 = vld [vmem:[%s11 + $0x30] sm:$0xff]
      %v1736 = vld [vmem:[%s11 + $0x38] sm:$0xff]
      %v1737 = vld [vmem:[%s11 + $0x40] sm:$0xff]
      %v1738 = vld [vmem:[%s11 + $0x48] sm:$0xff]
      %v1739 = vld [vmem:[%s11 + $0x50] sm:$0xff]
      %v1740 = vld [vmem:[%s11 + $0x58] sm:$0xff]
      %v1741 = vld [vmem:[%s11 + $0x60] sm:$0xff]
      %v1742 = vld [vmem:[%s11 + $0x68] sm:$0xff]
      %v1743 = vld [vmem:[%s11 + $0x70] sm:$0xff]
      %v1744 = vld [vmem:[%s11 + $0x78] sm:$0xff]
      %v1745 = vld [vmem:[%s11 + $0x80] sm:$0xff]
      %v1746 = vld [vmem:[%s11 + $0x88] sm:$0xff]
      %v1747 = vld [vmem:[%s11 + $0x90] sm:$0xff]
      %v1748 = vld [vmem:[%s11 + $0x98] sm:$0xff]
      %v1749 = vld [vmem:[%s11 + $0xa0] sm:$0xff]
      %v1750 = vld [vmem:[%s11 + $0xa8] sm:$0xff]
      %v1751 = vld [vmem:[%s11 + $0xb0] sm:$0xff]
      %v1752 = vld [vmem:[%s11 + $0xb8] sm:$0xff]
      %v1753 = vld [vmem:[%s12] sm:$0x1]
      %v1755 = vperm.slane %v1753, 0
      %vm1757 = vcmask 523264
      %v1759 = vsel %vm1757, %v1724, 0
      %v1762 = vsel %vm1757, %v1726, 0
      %v1765 = vsel %vm1757, %v1728, 0
      %1767 = vmatpush.msra.mxu0 %v1744
      %1768 = vmatpush.msra.mxu0 %v1743
      %1769 = vmatpush.msra.mxu0 %v1742
      %1770 = vmatpush.msra.mxu0 %v1741
      %1771 = vmatpush.msra.mxu0 %v1740
      %1772 = vmatpush.msra.mxu0 %v1739
      %1773 = vmatpush.msra.mxu0 %v1738
      %1774 = vmatpush.msra.mxu0 %v1737
      %1775 = vmatpush.msra.mxu0 %v1736
      %1776 = vmatpush.msra.mxu0 %v1735
      %1777 = vmatpush.msra.mxu0 %v1734
      %1778 = vmatpush.msra.mxu0 %v1733
      %1779 = vmatpush.msra.mxu0 %v1732
      %1780 = vmatpush.msra.mxu0 %v1731
      %1781 = vmatpush.msra.mxu0 %v1730
      %1782 = vmatpush.msra.mxu0 %v1729
      %1783 = vmatmul.f32.gmra.mxu0 %v1723
      %v1784 = vpop.f32.mrf.mxu0
      %v1785 = vadd.f32 %v1755, %v1784
      %1786 = vmatmul.f32.gmra.mxu0 %v1725
      %v1787 = vpop.f32.mrf.mxu0
      %v1788 = vadd.f32 %v1755, %v1787
      %1789 = vmatmul.f32.gmra.mxu0 %v1727
      %v1790 = vpop.f32.mrf.mxu0
      %v1791 = vadd.f32 %v1755, %v1790
      %1792 = vdwg.mxu0
      %1793 = vmatpush.msra.mxu0 0.0
      %1794 = vmatpush.msra.mxu0 0.0
      %1795 = vmatpush.msra.mxu0 0.0
      %1796 = vmatpush.msra.mxu0 0.0
      %1797 = vmatpush.msra.mxu0 0.0
      %1798 = vmatpush.msra.mxu0 0.0
      %1799 = vmatpush.msra.mxu0 0.0
      %1800 = vmatpush.msra.mxu0 0.0
      %1801 = vmatpush.msra.mxu0 %v1752
      %1802 = vmatpush.msra.mxu0 %v1751
      %1803 = vmatpush.msra.mxu0 %v1750
      %1804 = vmatpush.msra.mxu0 %v1749
      %1805 = vmatpush.msra.mxu0 %v1748
      %1806 = vmatpush.msra.mxu0 %v1747
      %1807 = vmatpush.msra.mxu0 %v1746
      %1808 = vmatpush.msra.mxu0 %v1745
      %1809 = vmatmul.f32.gmra.mxu0 %v1759
      %v1810 = vpop.f32.mrf.mxu0
      %v1811 = vadd.f32 %v1785, %v1810
      %1812 = vmatmul.f32.gmra.mxu0 %v1762
      %v1813 = vpop.f32.mrf.mxu0
      %v1814 = vadd.f32 %v1788, %v1813
      %1815 = vmatmul.f32.gmra.mxu0 %v1765
      %v1816 = vpop.f32.mrf.mxu0
      %v1817 = vadd.f32 %v1791, %v1816
      %1818 = vdwg.mxu0
      %v1819 = vadd.f32 %v1327, %v1811
      %v1820 = vadd.f32 %v1328, %v1814
      %v1821 = vadd.f32 %v1329, %v1817
      %1822 = vst.msk [vmem:[%s440] sm:$0xff] %vm446, %v1819
      %1823 = vst.msk [vmem:[%s440 + $0x8] sm:$0xff] %vm446, %v1820
      %1824 = vst.msk [vmem:[%s440 + $0x10] sm:$0x1] %vm453, %v1821
      %p1825 = scmp.lt.s32.totalorder %s24, 1
      %s1826 = scalar_select %p1825, %s24, 1
      %s1827 = smul.addr %s1826, 3
      %s1828 = smul.addr %s1827, 8
      %s1829 = scalar_lea.vmem %s13, %s1828
      // Predicated region
      $region73: #{vit_forward.5} parent=71 // pred_check
        %p1830 = pneg %p320
      $region74: #{vit_forward.5} parent=71 // pred_check_branch
        %1832 = sbr.rel (%p1830) target = $region76
      $region75: #{vit_forward.5} parent=71 // pred_region
        _
      $region76: #{vit_forward.5} parent=71 // pred_fallthru
        _
    $region72: #{vit_forward.5} parent=5 // pred_fallthru
      _
    %p1833 = scmp.le.s32.totalorder 2, %s19
    // Predicated region
    $region77: #{vit_forward.5} parent=5 // pred_check
      %p1834 = pneg %p1833
    $region78: #{vit_forward.5} parent=5 // pred_check_branch
      %1836 = sbr.rel (%p1834) target = $region80
    $region79: #{vit_forward.5} parent=5 // pred_region
      %s1837 = ssub.s32 %s19, 2
      // Predicated region
      $region81: #{vit_forward.5} parent=79 // pred_check
        %p1838 = pneg %p326
      $region82: #{vit_forward.5} parent=79 // pred_check_branch
        %1840 = sbr.rel (%p1838) target = $region84
      $region83: #{vit_forward.5} parent=79 // pred_region
        %p1841 = scmp.lt.s32.totalorder %s25, 1
        %s1842 = scalar_select %p1841, %s25, 1
        %s1843 = smul.addr %s1842, 3
        %s1844 = smul.addr %s1843, 8
        %s1845 = scalar_lea.vmem %s13, %s1844
      $region84: #{vit_forward.5} parent=79 // pred_fallthru
        _
    $region80: #{vit_forward.5} parent=5 // pred_fallthru
      _
  $region6: #{vit_forward.5} parent=0 // loop_footer
    %s23 = sadd.s32 1, %s19
  $region7: #{vit_forward.5} parent=0 // loop_footer_branch
    %18 = sbr.rel target = $region3
  $region8: #{vit_forward.5} parent=0 // loop_exit
    _

</llo_original>
